<compile_context>
chip_gen: v5e
topology: v5e:2x2
jax: 0.10.0
libtpu: 0.0.40
codegen_flags: <defaults>
</compile_context>

<pallas_src>
import functools

import jax
import jax.numpy as jnp
from jax.experimental import pallas as pl
from jax.experimental.pallas import tpu as pltpu


def _round_up(a, b):
    return (a + b - 1) // b * b


# ----------------------------------------------------------------------------
# Fused kernel: one batch-chunk per grid step; everything stays in VMEM/vregs.
#   x_ref : (Cin, LW_in)         bf16, NB padded images flattened on lanes
#   m_ref : (1,  LW_in)          f32 interior mask (0 on the padded border)
#   wa_ref: (2*Cap, Cin)         bf16 1x1 conv weight (halves sublane-aligned)
#   ba_ref: (2*Cap, 1)           f32 1x1 conv bias
#   wb_ref: (k*k, 2*Coutp, Cap)  bf16 kxk conv weight, one matrix per tap
#   bb_ref: (2*Coutp, 1)         f32 kxk conv bias
#   o_ref : (Coutp, LW)          lane-dense stride-1 conv output (per chunk)
# ----------------------------------------------------------------------------
def _group_fused_kernel(x_ref, m_ref, wa_ref, ba_ref, wb_ref, bb_ref, o_ref, *,
                        Wp, k, Cap, Coutp):
    # ---- stage A: 1x1 conv (= channel matmul) + bias + max-feature-map ----
    ya = jnp.dot(wa_ref[...], x_ref[...], preferred_element_type=jnp.float32)
    ya = ya + ba_ref[...]
    # mask multiply zeroes the bias-contaminated padded border (one VPU op)
    y1 = jnp.maximum(ya[:Cap], ya[Cap:]) * m_ref[...]
    z = y1.astype(x_ref.dtype)                      # back to bf16 for the MXU

    # ---- stage B: kxk conv as k*k lane-shifted tap matmuls, f32 accumulate --
    # Tap (di, dj) over the flattened padded image is the contiguous lane
    # slice at offset di*Wp + dj; any cross-image / tail leakage only lands in
    # garbage columns that the wrapper drops.
    LW = o_ref.shape[-1]
    acc = jnp.zeros((2 * Coutp, LW), jnp.float32)
    for di in range(k):
        for dj in range(k):
            off = di * Wp + dj
            acc = acc + jnp.dot(wb_ref[di * k + dj], z[:, off:off + LW],
                                preferred_element_type=jnp.float32)
    acc = acc + bb_ref[...]
    o_ref[...] = jnp.maximum(acc[:Coutp], acc[Coutp:]).astype(o_ref.dtype)


# ----------------------------------------------------------------------------
# One-time parameter preparation (NOT per forward call).
# ----------------------------------------------------------------------------
def prepare_group_params(wa, ba, wb, bb, *, compute_dtype=jnp.bfloat16):
    two_ca, cin = wa.shape[0], wa.shape[1]
    Ca = two_ca // 2
    two_cout, ca_b, k, k2 = wb.shape
    Cout = two_cout // 2
    assert k == k2
    assert ca_b == Ca, "conv input channels must equal conv_a output channels"
    Cap = _round_up(Ca, 8)        # sublane-aligned mfm split
    Coutp = _round_up(Cout, 8)

    wa2 = wa.reshape(2 * Ca, cin)
    waP = jnp.zeros((2 * Cap, cin), jnp.float32)
    waP = waP.at[:Ca].set(wa2[:Ca]).at[Cap:Cap + Ca].set(wa2[Ca:])
    baP = jnp.zeros((2 * Cap, 1), jnp.float32)
    baP = baP.at[:Ca, 0].set(ba[:Ca]).at[Cap:Cap + Ca, 0].set(ba[Ca:])

    # (2Cout, Ca, kh, kw) -> (kh*kw, 2Coutp, Cap), zero-padded channels
    wbt = jnp.transpose(wb, (2, 3, 0, 1)).reshape(k * k, 2 * Cout, Ca)
    wbP = jnp.zeros((k * k, 2 * Coutp, Cap), jnp.float32)
    wbP = wbP.at[:, :Cout, :Ca].set(wbt[:, :Cout])
    wbP = wbP.at[:, Coutp:Coutp + Cout, :Ca].set(wbt[:, Cout:])
    bbP = jnp.zeros((2 * Coutp, 1), jnp.float32)
    bbP = bbP.at[:Cout, 0].set(bb[:Cout]).at[Coutp:Coutp + Cout, 0].set(bb[Cout:])

    return dict(waP=waP.astype(compute_dtype), baP=baP,
                wbP=wbP.astype(compute_dtype), bbP=bbP,
                Cin=cin, Ca=Ca, Cap=Cap, Cout=Cout, Coutp=Coutp, k=k,
                compute_dtype=compute_dtype)


# ----------------------------------------------------------------------------
# Forward pass for NCHW input.
# ----------------------------------------------------------------------------
def group_forward(x_nchw, params, *, stride, padding, batch_block=8):
    N, Cin, H, W = x_nchw.shape
    assert Cin == params["Cin"], "input channel mismatch with conv_a weights"
    k, s, p = params["k"], stride, padding
    Cap, Coutp, Cout = params["Cap"], params["Coutp"], params["Cout"]
    cdt = params["compute_dtype"]

    Hp, Wp = H + 2 * p, W + 2 * p
    Ho = (Hp - k) // s + 1
    Wo = (Wp - k) // s + 1

    # batch blocking: NB images per grid step, their flattened padded pixels
    # concatenated on the lane axis (weights are shared across the batch).
    NB = min(N, batch_block)
    while N % NB:
        NB -= 1
    Nc = N // NB
    Lout = NB * Hp * Wp
    LW = _round_up(Lout, 128)                 # lane-dense output width
    tail = (k - 1) * Wp + (k - 1)             # halo needed by the last tap
    LW_in = _round_up(LW + tail, 128)

    # pad spatially in the wrapper (XLA/HBM), fold batch onto lanes, cast bf16
    xp = jnp.pad(x_nchw, ((0, 0), (0, 0), (p, p), (p, p)))
    xp = xp.reshape(Nc, NB, Cin, Hp * Wp).transpose(0, 2, 1, 3)
    xp = xp.reshape(Nc, Cin, Lout)
    xp = jnp.pad(xp, ((0, 0), (0, 0), (0, LW_in - Lout))).astype(cdt)

    # interior mask: 1 inside each image, 0 on padded border / lane tail
    m = jnp.zeros((Hp, Wp), jnp.float32).at[p:p + H, p:p + W].set(1.0)
    m = jnp.tile(m.reshape(1, Hp * Wp), (1, NB))
    m = jnp.pad(m, ((0, 0), (0, LW_in - Lout)))

    kern = functools.partial(_group_fused_kernel, Wp=Wp, k=k, Cap=Cap,
                             Coutp=Coutp)
    # TODO(synk): for production light_cnn sizes, additionally tile output
    # rows (k-1 row halo) so the per-step working set stays inside VMEM
    # (v7x: 64 MiB) and set vmem_limit_bytes in CompilerParams.
    out = pl.pallas_call(
        kern,
        out_shape=jax.ShapeDtypeStruct((Nc, Coutp, LW), x_nchw.dtype),
        grid=(Nc,),
        in_specs=[
            pl.BlockSpec((None, Cin, LW_in), lambda n: (n, 0, 0)),
            pl.BlockSpec((1, LW_in), lambda n: (0, 0)),
            pl.BlockSpec((2 * Cap, Cin), lambda n: (0, 0)),
            pl.BlockSpec((2 * Cap, 1), lambda n: (0, 0)),
            pl.BlockSpec((k * k, 2 * Coutp, Cap), lambda n: (0, 0, 0)),
            pl.BlockSpec((2 * Coutp, 1), lambda n: (0, 0)),
        ],
        out_specs=pl.BlockSpec((None, Coutp, LW), lambda n: (n, 0, 0)),
        compiler_params=pltpu.CompilerParams(
            dimension_semantics=("parallel",)),
    )(xp, m, params["waP"], params["baP"], params["wbP"], params["bbP"])

    # drop padded channels / garbage columns and apply stride with XLA
    out = out[:, :Cout, :Lout].reshape(Nc, Cout, NB, Hp, Wp)
    out = out.transpose(0, 2, 1, 3, 4).reshape(N, Cout, Hp, Wp)
    out = out[:, :, 0:(Ho - 1) * s + 1:s, 0:(Wo - 1) * s + 1:s]
    return out


# ----------------------------------------------------------------------------
# Pure-JAX reference mirroring the kernel's bf16-input numerics.
# ----------------------------------------------------------------------------
def reference_group(x, wa, ba, wb, bb, *, stride, padding,
                    compute_dtype=jnp.bfloat16):
    def q(a):
        return a.astype(compute_dtype).astype(jnp.float32)

    def mfm_conv(xx, w, b, s, p):
        y = jax.lax.conv_general_dilated(
            q(xx), q(w), (s, s), [(p, p), (p, p)],
            dimension_numbers=("NCHW", "OIHW", "NCHW"),
            precision=jax.lax.Precision.HIGHEST)
        y = y + b.reshape(1, -1, 1, 1)
        c = w.shape[0] // 2
        return jnp.maximum(y[:, :c], y[:, c:])

    y = mfm_conv(x, wa, ba, 1, 0)
    return mfm_conv(y, wb, bb, stride, padding)


if __name__ == "__main__":
    # Module config consistent with group(in_ch=4, out_ch=8, 3, 1, 1)
    N, Cin, H, W = 2, 4, 16, 16
    Cout, K, S, P = 8, 3, 1, 1

    key = jax.random.PRNGKey(0)
    k1, k2, k3, k4, k5 = jax.random.split(key, 5)
    x = jax.random.normal(k1, (N, Cin, H, W), jnp.float32)
    # conv_a: Conv2d(Cin, 2*Cin, 1, 1, 0)
    wa = 0.1 * jax.random.normal(k2, (2 * Cin, Cin, 1, 1), jnp.float32)
    ba = 0.1 * jax.random.normal(k3, (2 * Cin,), jnp.float32)
    # conv: Conv2d(Cin, 2*Cout, K, S, P)
    wb = 0.1 * jax.random.normal(k4, (2 * Cout, Cin, K, K), jnp.float32)
    bb = 0.1 * jax.random.normal(k5, (2 * Cout,), jnp.float32)

    params = prepare_group_params(wa, ba, wb, bb)
    out = group_forward(x, params, stride=S, padding=P)
    out = jax.block_until_ready(out)

    ref = reference_group(x, wa, ba, wb, bb, stride=S, padding=P)
    ref = jax.block_until_ready(ref)

    assert out.shape == (N, Cout, H, W), out.shape
    assert jnp.allclose(out, ref, atol=5e-3, rtol=5e-3), \
        float(jnp.max(jnp.abs(out - ref)))
    print("KERNEL_OK")
</pallas_src>

<mosaic_0001>
module attributes {stable_mosaic.version = 11 : i64} {
  func.func @_group_fused_kernel(%arg0: i32, %arg1: memref<1x4x896xbf16, #tpu.memory_space<vmem>>, %arg2: memref<1x896xf32, #tpu.memory_space<vmem>>, %arg3: memref<16x4xbf16, #tpu.memory_space<vmem>>, %arg4: memref<16x1xf32, #tpu.memory_space<vmem>>, %arg5: memref<9x16x8xbf16, #tpu.memory_space<vmem>>, %arg6: memref<16x1xf32, #tpu.memory_space<vmem>>, %arg7: memref<1x8x768xf32, #tpu.memory_space<vmem>>) attributes {dimension_semantics = [#tpu.dimension_semantics<parallel>], iteration_bounds = array<i64: 1>, scalar_prefetch = 0 : i64, scratch_operands = 0 : i64, tpu.core_type = #tpu.core_type<tc>, window_params = [{transform_indices = @transform_0, window_bounds = array<i64: 1, 4, 896>}, {pipeline_mode = #tpu.pipeline_mode<synchronous>, transform_indices = @transform_1, window_bounds = array<i64: 1, 896>}, {pipeline_mode = #tpu.pipeline_mode<synchronous>, transform_indices = @transform_2, window_bounds = array<i64: 16, 4>}, {pipeline_mode = #tpu.pipeline_mode<synchronous>, transform_indices = @transform_3, window_bounds = array<i64: 16, 1>}, {pipeline_mode = #tpu.pipeline_mode<synchronous>, transform_indices = @transform_4, window_bounds = array<i64: 9, 16, 8>}, {pipeline_mode = #tpu.pipeline_mode<synchronous>, transform_indices = @transform_5, window_bounds = array<i64: 16, 1>}, {transform_indices = @transform_6, window_bounds = array<i64: 1, 8, 768>}]} {
    %c0 = arith.constant 0 : index
    %c0_0 = arith.constant 0 : index
    %0 = vector.load %arg3[%c0, %c0_0] : memref<16x4xbf16, #tpu.memory_space<vmem>>, vector<16x4xbf16>
    %c0_1 = arith.constant 0 : index
    %c0_2 = arith.constant 0 : index
    %c0_3 = arith.constant 0 : index
    %1 = vector.load %arg1[%c0_1, %c0_2, %c0_3] : memref<1x4x896xbf16, #tpu.memory_space<vmem>>, vector<1x4x896xbf16>
    %2 = vector.shape_cast %1 : vector<1x4x896xbf16> to vector<4x896xbf16>
    %cst = arith.constant dense<0.000000e+00> : vector<16x896xf32>
    %3 = tpu.matmul %0, %2, %cst {dimension_numbers = #tpu.dot_dimension_numbers<[1], [0], [0], [1], [0, 0, 1, 1], [], []>} : vector<16x4xbf16>, vector<4x896xbf16>, vector<16x896xf32> -> vector<16x896xf32>
    %c0_4 = arith.constant 0 : index
    %c0_5 = arith.constant 0 : index
    %4 = vector.load %arg4[%c0_4, %c0_5] : memref<16x1xf32, #tpu.memory_space<vmem>>, vector<16x1xf32>
    %5 = vector.broadcast %4 : vector<16x1xf32> to vector<16x896xf32>
    %6 = arith.addf %3, %5 : vector<16x896xf32>
    %7 = vector.extract_strided_slice %6 {offsets = [0, 0], sizes = [8, 896], strides = [1, 1]} : vector<16x896xf32> to vector<8x896xf32>
    %8 = vector.extract_strided_slice %6 {offsets = [8, 0], sizes = [8, 896], strides = [1, 1]} : vector<16x896xf32> to vector<8x896xf32>
    %9 = arith.maximumf %7, %8 : vector<8x896xf32>
    %c0_6 = arith.constant 0 : index
    %c0_7 = arith.constant 0 : index
    %10 = vector.load %arg2[%c0_6, %c0_7] : memref<1x896xf32, #tpu.memory_space<vmem>>, vector<1x896xf32>
    %11 = vector.broadcast %10 : vector<1x896xf32> to vector<8x896xf32>
    %12 = arith.mulf %9, %11 : vector<8x896xf32>
    %13 = arith.truncf %12 : vector<8x896xf32> to vector<8x896xbf16>
    %cst_8 = arith.constant 0.000000e+00 : f32
    %14 = vector.broadcast %cst_8 : f32 to vector<16x768xf32>
    %c0_9 = arith.constant 0 : index
    %c0_10 = arith.constant 0 : index
    %c0_11 = arith.constant 0 : index
    %15 = vector.load %arg5[%c0_9, %c0_10, %c0_11] : memref<9x16x8xbf16, #tpu.memory_space<vmem>>, vector<1x16x8xbf16>
    %16 = vector.shape_cast %15 : vector<1x16x8xbf16> to vector<16x8xbf16>
    %17 = vector.extract_strided_slice %13 {offsets = [0, 0], sizes = [8, 768], strides = [1, 1]} : vector<8x896xbf16> to vector<8x768xbf16>
    %cst_12 = arith.constant dense<0.000000e+00> : vector<16x768xf32>
    %18 = tpu.matmul %16, %17, %cst_12 {dimension_numbers = #tpu.dot_dimension_numbers<[1], [0], [0], [1], [0, 0, 1, 1], [], []>} : vector<16x8xbf16>, vector<8x768xbf16>, vector<16x768xf32> -> vector<16x768xf32>
    %19 = arith.addf %14, %18 : vector<16x768xf32>
    %c1 = arith.constant 1 : index
    %c0_13 = arith.constant 0 : index
    %c0_14 = arith.constant 0 : index
    %20 = vector.load %arg5[%c1, %c0_13, %c0_14] : memref<9x16x8xbf16, #tpu.memory_space<vmem>>, vector<1x16x8xbf16>
    %21 = vector.shape_cast %20 : vector<1x16x8xbf16> to vector<16x8xbf16>
    %22 = vector.extract_strided_slice %13 {offsets = [0, 1], sizes = [8, 768], strides = [1, 1]} : vector<8x896xbf16> to vector<8x768xbf16>
    %cst_15 = arith.constant dense<0.000000e+00> : vector<16x768xf32>
    %23 = tpu.matmul %21, %22, %cst_15 {dimension_numbers = #tpu.dot_dimension_numbers<[1], [0], [0], [1], [0, 0, 1, 1], [], []>} : vector<16x8xbf16>, vector<8x768xbf16>, vector<16x768xf32> -> vector<16x768xf32>
    %24 = arith.addf %19, %23 : vector<16x768xf32>
    %c2 = arith.constant 2 : index
    %c0_16 = arith.constant 0 : index
    %c0_17 = arith.constant 0 : index
    %25 = vector.load %arg5[%c2, %c0_16, %c0_17] : memref<9x16x8xbf16, #tpu.memory_space<vmem>>, vector<1x16x8xbf16>
    %26 = vector.shape_cast %25 : vector<1x16x8xbf16> to vector<16x8xbf16>
    %27 = vector.extract_strided_slice %13 {offsets = [0, 2], sizes = [8, 768], strides = [1, 1]} : vector<8x896xbf16> to vector<8x768xbf16>
    %cst_18 = arith.constant dense<0.000000e+00> : vector<16x768xf32>
    %28 = tpu.matmul %26, %27, %cst_18 {dimension_numbers = #tpu.dot_dimension_numbers<[1], [0], [0], [1], [0, 0, 1, 1], [], []>} : vector<16x8xbf16>, vector<8x768xbf16>, vector<16x768xf32> -> vector<16x768xf32>
    %29 = arith.addf %24, %28 : vector<16x768xf32>
    %c3 = arith.constant 3 : index
    %c0_19 = arith.constant 0 : index
    %c0_20 = arith.constant 0 : index
    %30 = vector.load %arg5[%c3, %c0_19, %c0_20] : memref<9x16x8xbf16, #tpu.memory_space<vmem>>, vector<1x16x8xbf16>
    %31 = vector.shape_cast %30 : vector<1x16x8xbf16> to vector<16x8xbf16>
    %32 = vector.extract_strided_slice %13 {offsets = [0, 18], sizes = [8, 768], strides = [1, 1]} : vector<8x896xbf16> to vector<8x768xbf16>
    %cst_21 = arith.constant dense<0.000000e+00> : vector<16x768xf32>
    %33 = tpu.matmul %31, %32, %cst_21 {dimension_numbers = #tpu.dot_dimension_numbers<[1], [0], [0], [1], [0, 0, 1, 1], [], []>} : vector<16x8xbf16>, vector<8x768xbf16>, vector<16x768xf32> -> vector<16x768xf32>
    %34 = arith.addf %29, %33 : vector<16x768xf32>
    %c4 = arith.constant 4 : index
    %c0_22 = arith.constant 0 : index
    %c0_23 = arith.constant 0 : index
    %35 = vector.load %arg5[%c4, %c0_22, %c0_23] : memref<9x16x8xbf16, #tpu.memory_space<vmem>>, vector<1x16x8xbf16>
    %36 = vector.shape_cast %35 : vector<1x16x8xbf16> to vector<16x8xbf16>
    %37 = vector.extract_strided_slice %13 {offsets = [0, 19], sizes = [8, 768], strides = [1, 1]} : vector<8x896xbf16> to vector<8x768xbf16>
    %cst_24 = arith.constant dense<0.000000e+00> : vector<16x768xf32>
    %38 = tpu.matmul %36, %37, %cst_24 {dimension_numbers = #tpu.dot_dimension_numbers<[1], [0], [0], [1], [0, 0, 1, 1], [], []>} : vector<16x8xbf16>, vector<8x768xbf16>, vector<16x768xf32> -> vector<16x768xf32>
    %39 = arith.addf %34, %38 : vector<16x768xf32>
    %c5 = arith.constant 5 : index
    %c0_25 = arith.constant 0 : index
    %c0_26 = arith.constant 0 : index
    %40 = vector.load %arg5[%c5, %c0_25, %c0_26] : memref<9x16x8xbf16, #tpu.memory_space<vmem>>, vector<1x16x8xbf16>
    %41 = vector.shape_cast %40 : vector<1x16x8xbf16> to vector<16x8xbf16>
    %42 = vector.extract_strided_slice %13 {offsets = [0, 20], sizes = [8, 768], strides = [1, 1]} : vector<8x896xbf16> to vector<8x768xbf16>
    %cst_27 = arith.constant dense<0.000000e+00> : vector<16x768xf32>
    %43 = tpu.matmul %41, %42, %cst_27 {dimension_numbers = #tpu.dot_dimension_numbers<[1], [0], [0], [1], [0, 0, 1, 1], [], []>} : vector<16x8xbf16>, vector<8x768xbf16>, vector<16x768xf32> -> vector<16x768xf32>
    %44 = arith.addf %39, %43 : vector<16x768xf32>
    %c6 = arith.constant 6 : index
    %c0_28 = arith.constant 0 : index
    %c0_29 = arith.constant 0 : index
    %45 = vector.load %arg5[%c6, %c0_28, %c0_29] : memref<9x16x8xbf16, #tpu.memory_space<vmem>>, vector<1x16x8xbf16>
    %46 = vector.shape_cast %45 : vector<1x16x8xbf16> to vector<16x8xbf16>
    %47 = vector.extract_strided_slice %13 {offsets = [0, 36], sizes = [8, 768], strides = [1, 1]} : vector<8x896xbf16> to vector<8x768xbf16>
    %cst_30 = arith.constant dense<0.000000e+00> : vector<16x768xf32>
    %48 = tpu.matmul %46, %47, %cst_30 {dimension_numbers = #tpu.dot_dimension_numbers<[1], [0], [0], [1], [0, 0, 1, 1], [], []>} : vector<16x8xbf16>, vector<8x768xbf16>, vector<16x768xf32> -> vector<16x768xf32>
    %49 = arith.addf %44, %48 : vector<16x768xf32>
    %c7 = arith.constant 7 : index
    %c0_31 = arith.constant 0 : index
    %c0_32 = arith.constant 0 : index
    %50 = vector.load %arg5[%c7, %c0_31, %c0_32] : memref<9x16x8xbf16, #tpu.memory_space<vmem>>, vector<1x16x8xbf16>
    %51 = vector.shape_cast %50 : vector<1x16x8xbf16> to vector<16x8xbf16>
    %52 = vector.extract_strided_slice %13 {offsets = [0, 37], sizes = [8, 768], strides = [1, 1]} : vector<8x896xbf16> to vector<8x768xbf16>
    %cst_33 = arith.constant dense<0.000000e+00> : vector<16x768xf32>
    %53 = tpu.matmul %51, %52, %cst_33 {dimension_numbers = #tpu.dot_dimension_numbers<[1], [0], [0], [1], [0, 0, 1, 1], [], []>} : vector<16x8xbf16>, vector<8x768xbf16>, vector<16x768xf32> -> vector<16x768xf32>
    %54 = arith.addf %49, %53 : vector<16x768xf32>
    %c8 = arith.constant 8 : index
    %c0_34 = arith.constant 0 : index
    %c0_35 = arith.constant 0 : index
    %55 = vector.load %arg5[%c8, %c0_34, %c0_35] : memref<9x16x8xbf16, #tpu.memory_space<vmem>>, vector<1x16x8xbf16>
    %56 = vector.shape_cast %55 : vector<1x16x8xbf16> to vector<16x8xbf16>
    %57 = vector.extract_strided_slice %13 {offsets = [0, 38], sizes = [8, 768], strides = [1, 1]} : vector<8x896xbf16> to vector<8x768xbf16>
    %cst_36 = arith.constant dense<0.000000e+00> : vector<16x768xf32>
    %58 = tpu.matmul %56, %57, %cst_36 {dimension_numbers = #tpu.dot_dimension_numbers<[1], [0], [0], [1], [0, 0, 1, 1], [], []>} : vector<16x8xbf16>, vector<8x768xbf16>, vector<16x768xf32> -> vector<16x768xf32>
    %59 = arith.addf %54, %58 : vector<16x768xf32>
    %c0_37 = arith.constant 0 : index
    %c0_38 = arith.constant 0 : index
    %60 = vector.load %arg6[%c0_37, %c0_38] : memref<16x1xf32, #tpu.memory_space<vmem>>, vector<16x1xf32>
    %61 = vector.broadcast %60 : vector<16x1xf32> to vector<16x768xf32>
    %62 = arith.addf %59, %61 : vector<16x768xf32>
    %63 = vector.extract_strided_slice %62 {offsets = [0, 0], sizes = [8, 768], strides = [1, 1]} : vector<16x768xf32> to vector<8x768xf32>
    %64 = vector.extract_strided_slice %62 {offsets = [8, 0], sizes = [8, 768], strides = [1, 1]} : vector<16x768xf32> to vector<8x768xf32>
    %65 = arith.maximumf %63, %64 : vector<8x768xf32>
    %c0_39 = arith.constant 0 : index
    %c0_40 = arith.constant 0 : index
    %c0_41 = arith.constant 0 : index
    %66 = vector.load %arg7[%c0_39, %c0_40, %c0_41] : memref<1x8x768xf32, #tpu.memory_space<vmem>>, vector<1x8x768xf32>
    %67 = vector.shape_cast %66 : vector<1x8x768xf32> to vector<8x768xf32>
    %68 = vector.shape_cast %65 : vector<8x768xf32> to vector<1x8x768xf32>
    tpu.vector_store %arg7[%c0_39, %c0_40, %c0_41], %68 {strides = array<i32>} : memref<1x8x768xf32, #tpu.memory_space<vmem>>, vector<1x8x768xf32>,
    return
  }
  func.func @transform_0(%arg0: i32) -> (i32, i32, i32) {
    %c0_i32 = arith.constant 0 : i32
    %c0_i32_0 = arith.constant 0 : i32
    %c0_i32_1 = arith.constant 0 : i32
    return %arg0, %c0_i32, %c0_i32_0 : i32, i32, i32
  }
  func.func @transform_1(%arg0: i32) -> (i32, i32) {
    %c0_i32 = arith.constant 0 : i32
    %c0_i32_0 = arith.constant 0 : i32
    %c0_i32_1 = arith.constant 0 : i32
    return %c0_i32, %c0_i32_0 : i32, i32
  }
  func.func @transform_2(%arg0: i32) -> (i32, i32) {
    %c0_i32 = arith.constant 0 : i32
    %c0_i32_0 = arith.constant 0 : i32
    %c0_i32_1 = arith.constant 0 : i32
    return %c0_i32, %c0_i32_0 : i32, i32
  }
  func.func @transform_3(%arg0: i32) -> (i32, i32) {
    %c0_i32 = arith.constant 0 : i32
    %c0_i32_0 = arith.constant 0 : i32
    %c0_i32_1 = arith.constant 0 : i32
    return %c0_i32, %c0_i32_0 : i32, i32
  }
  func.func @transform_4(%arg0: i32) -> (i32, i32, i32) {
    %c0_i32 = arith.constant 0 : i32
    %c0_i32_0 = arith.constant 0 : i32
    %c0_i32_1 = arith.constant 0 : i32
    %c0_i32_2 = arith.constant 0 : i32
    return %c0_i32, %c0_i32_0, %c0_i32_1 : i32, i32, i32
  }
  func.func @transform_5(%arg0: i32) -> (i32, i32) {
    %c0_i32 = arith.constant 0 : i32
    %c0_i32_0 = arith.constant 0 : i32
    %c0_i32_1 = arith.constant 0 : i32
    return %c0_i32, %c0_i32_0 : i32, i32
  }
  func.func @transform_6(%arg0: i32) -> (i32, i32, i32) {
    %c0_i32 = arith.constant 0 : i32
    %c0_i32_0 = arith.constant 0 : i32
    %c0_i32_1 = arith.constant 0 : i32
    return %arg0, %c0_i32, %c0_i32_0 : i32, i32, i32
  }
}

</mosaic_0001>

<llo_original>
// kernel: tpu_custom_call.1
$region0: #{tpu_custom_call.1}
  #allocation0 [shape = 'u32[]', space=smem, size = 0x4, offset = 0x4, fixed_abs, tag = 'smem constant byte address 0x4 - core index']
  #allocation1 [shape = 'u32[72,128]{1,0:T(1,128)}', space=vmem, size = 0x9000, scoped, tag = 'internal scratch']
  %s0 = inlined_call_operand.vmem [shape: bf16[1,4,896], index: 0, kind: input, shape index: {}]
  %s1 = inlined_call_operand.vmem [shape: f32[1,896], index: 1, kind: input, shape index: {}]
  %s2 = inlined_call_operand.vmem [shape: bf16[16,4], index: 2, kind: input, shape index: {}]
  %s3 = inlined_call_operand.vmem [shape: f32[16,1], index: 3, kind: input, shape index: {}]
  %s4 = inlined_call_operand.vmem [shape: bf16[9,16,8], index: 4, kind: input, shape index: {}]
  %s5 = inlined_call_operand.vmem [shape: f32[16,1], index: 5, kind: input, shape index: {}]
  %s6 = inlined_call_operand.hbm [shape: f32[1,8,768], index: 6, kind: output, shape index: {}]
  %s7 = sld [smem:[#allocation0]]
  $region34: #{tpu_custom_call.1} parent=0
    _
  %s9 = ssub.s32 1, %s7
  %s10 = scalar_select 0, %s9, %s7
  $region1: #{tpu_custom_call.1} parent=0
    #allocation2 [shape = 'u8[24576]{0}', space=vmem, size = 0x6000, scoped, tag = 'output window, operand 0, single buffered']
    #allocation3 [shape = 's32[1]{0}', space=sflag, size = 0x4, scoped, tag = 'scoped memory for tpu_custom_call.1']
    %11 = vsyncpa [#allocation3], 0
    // Predicated region
    $region2: #{tpu_custom_call.1} parent=1 // pred_check
      _
    $region3: #{tpu_custom_call.1} parent=1 // pred_check_branch
      %13 = sbr.rel (0) target = $region5
    $region4: #{tpu_custom_call.1} parent=1 // pred_region
      _
    $region5: #{tpu_custom_call.1} parent=1 // pred_fallthru
      _
    // Predicated region
    $region6: #{tpu_custom_call.1} parent=1 // pred_check
      _
    $region7: #{tpu_custom_call.1} parent=1 // pred_check_branch
      %15 = sbr.rel (0) target = $region9
    $region8: #{tpu_custom_call.1} parent=1 // pred_region
      _
    $region9: #{tpu_custom_call.1} parent=1 // pred_fallthru
      _
    // Predicated region
    $region10: #{tpu_custom_call.1} parent=1 // pred_check
      _
    $region11: #{tpu_custom_call.1} parent=1 // pred_check_branch
      %17 = sbr.rel (0) target = $region13
    $region12: #{tpu_custom_call.1} parent=1 // pred_region
      _
    $region13: #{tpu_custom_call.1} parent=1 // pred_fallthru
      _
    // Predicated region
    $region14: #{tpu_custom_call.1} parent=1 // pred_check
      _
    $region15: #{tpu_custom_call.1} parent=1 // pred_check_branch
      %19 = sbr.rel (0) target = $region17
    $region16: #{tpu_custom_call.1} parent=1 // pred_region
      _
    $region17: #{tpu_custom_call.1} parent=1 // pred_fallthru
      _
    // Predicated region
    $region18: #{tpu_custom_call.1} parent=1 // pred_check
      _
    $region19: #{tpu_custom_call.1} parent=1 // pred_check_branch
      %21 = sbr.rel (0) target = $region21
    $region20: #{tpu_custom_call.1} parent=1 // pred_region
      _
    $region21: #{tpu_custom_call.1} parent=1 // pred_fallthru
      _
    // Predicated region
    $region22: #{tpu_custom_call.1} parent=1 // pred_check
      _
    $region23: #{tpu_custom_call.1} parent=1 // pred_check_branch
      %23 = sbr.rel (0) target = $region25
    $region24: #{tpu_custom_call.1} parent=1 // pred_region
      _
    $region25: #{tpu_custom_call.1} parent=1 // pred_fallthru
      _
    %v25 = vld [vmem:[%s2] sm:$0xf]
    %v26 = vld [vmem:[%s2 + $0x4] sm:$0xf]
    %v27 = vld [vmem:[%s0] sm:$0xff]
    %v28 = vld [vmem:[%s0 + $0x8] sm:$0x3f]
    %v29 = vld [vmem:[%s3] sm:$0xff]
    %v30 = vld [vmem:[%s3 + $0x8] sm:$0xff]
    %32 = vset.pattern.permute.xlu0 0
    %33 = vperm.xlu0 %32, %v29
    %v34 = vpop.permute.xlu0 %33
    %37 = vset.pattern.permute.xlu0 0
    %38 = vperm.xlu0 %37, %v30
    %v39 = vpop.permute.xlu0 %38
    %v43 = vunpack.c.l.b16 %v25
    %v44 = vunpack.c.l.b16 %v26
    %v45 = vpack.c.b16 %v44, %v43
    %47 = vst [vmem:[#allocation1] ss:$4 sm:$0xff] %v27
    %s49 = scalar_lea.vmem [#allocation1], 32
    %50 = vst [vmem:[%s49] ss:$4 sm:$0xff] %v28
    %v51 = vld.sshfl [vmem:[#allocation1] sm:$0xff pattern:$0x73625140]
    %v52 = vld.sshfl [vmem:[#allocation1 + $0x8] sm:$0xff pattern:$0x73625140]
    %v53 = vld.sshfl [vmem:[#allocation1 + $0x10] sm:$0xff pattern:$0x73625140]
    %v54 = vld.sshfl [vmem:[#allocation1 + $0x18] sm:$0xff pattern:$0x73625140]
    %v55 = vld.sshfl [vmem:[#allocation1 + $0x20] sm:$0xff pattern:$0x73625140]
    %v56 = vld.sshfl [vmem:[#allocation1 + $0x28] sm:$0xff pattern:$0x73625140]
    %v57 = vld.sshfl [vmem:[#allocation1 + $0x30] sm:$0xff pattern:$0x73625140]
    %vm58 = vcmask 31744
    %v60 = vsel %vm58, %v45, 0
    %vm62 = vcmask 1041408
    %v63 = vsel %vm62, %v51, 0
    %v65 = vsel %vm62, %v52, 0
    %v67 = vsel %vm62, %v53, 0
    %v69 = vsel %vm62, %v54, 0
    %v71 = vsel %vm62, %v55, 0
    %v73 = vsel %vm62, %v56, 0
    %v75 = vsel %vm62, %v57, 0
    %77 = vmatpush.bf16.msra.mxu0 0
    %78 = vmatpush.bf16.msra.mxu0 0
    %79 = vmatpush.bf16.msra.mxu0 0
    %80 = vmatpush.bf16.msra.mxu0 0
    %81 = vmatpush.bf16.msra.mxu0 0
    %82 = vmatpush.bf16.msra.mxu0 0
    %83 = vmatpush.bf16.msra.mxu0 0
    %84 = vmatpush.bf16.msra.mxu0 %v63
    %85 = vmatmul.bf16.gmra.mxu0 %v60
    %v86 = vpop.f32.mrf.mxu0
    %v87 = vadd.f32 %v34, %v86
    %v88 = vpop.f32.mrf.mxu0
    %v89 = vadd.f32 %v39, %v88
    %90 = vdwg.mxu0
    %91 = vmatpush.bf16.msra.mxu0 0
    %92 = vmatpush.bf16.msra.mxu0 0
    %93 = vmatpush.bf16.msra.mxu0 0
    %94 = vmatpush.bf16.msra.mxu0 0
    %95 = vmatpush.bf16.msra.mxu0 0
    %96 = vmatpush.bf16.msra.mxu0 0
    %97 = vmatpush.bf16.msra.mxu0 0
    %98 = vmatpush.bf16.msra.mxu0 %v65
    %99 = vmatmul.bf16.gmra.mxu0 %v60
    %v100 = vpop.f32.mrf.mxu0
    %v101 = vadd.f32 %v34, %v100
    %v102 = vpop.f32.mrf.mxu0
    %v103 = vadd.f32 %v39, %v102
    %104 = vdwg.mxu0
    %105 = vmatpush.bf16.msra.mxu0 0
    %106 = vmatpush.bf16.msra.mxu0 0
    %107 = vmatpush.bf16.msra.mxu0 0
    %108 = vmatpush.bf16.msra.mxu0 0
    %109 = vmatpush.bf16.msra.mxu0 0
    %110 = vmatpush.bf16.msra.mxu0 0
    %111 = vmatpush.bf16.msra.mxu0 0
    %112 = vmatpush.bf16.msra.mxu0 %v67
    %113 = vmatmul.bf16.gmra.mxu0 %v60
    %v114 = vpop.f32.mrf.mxu0
    %v115 = vadd.f32 %v34, %v114
    %v116 = vpop.f32.mrf.mxu0
    %v117 = vadd.f32 %v39, %v116
    %118 = vdwg.mxu0
    %119 = vmatpush.bf16.msra.mxu0 0
    %120 = vmatpush.bf16.msra.mxu0 0
    %121 = vmatpush.bf16.msra.mxu0 0
    %122 = vmatpush.bf16.msra.mxu0 0
    %123 = vmatpush.bf16.msra.mxu0 0
    %124 = vmatpush.bf16.msra.mxu0 0
    %125 = vmatpush.bf16.msra.mxu0 0
    %126 = vmatpush.bf16.msra.mxu0 %v69
    %127 = vmatmul.bf16.gmra.mxu0 %v60
    %v128 = vpop.f32.mrf.mxu0
    %v129 = vadd.f32 %v34, %v128
    %v130 = vpop.f32.mrf.mxu0
    %v131 = vadd.f32 %v39, %v130
    %132 = vdwg.mxu0
    %133 = vmatpush.bf16.msra.mxu0 0
    %134 = vmatpush.bf16.msra.mxu0 0
    %135 = vmatpush.bf16.msra.mxu0 0
    %136 = vmatpush.bf16.msra.mxu0 0
    %137 = vmatpush.bf16.msra.mxu0 0
    %138 = vmatpush.bf16.msra.mxu0 0
    %139 = vmatpush.bf16.msra.mxu0 0
    %140 = vmatpush.bf16.msra.mxu0 %v71
    %141 = vmatmul.bf16.gmra.mxu0 %v60
    %v142 = vpop.f32.mrf.mxu0
    %v143 = vadd.f32 %v34, %v142
    %v144 = vpop.f32.mrf.mxu0
    %v145 = vadd.f32 %v39, %v144
    %146 = vdwg.mxu0
    %147 = vmatpush.bf16.msra.mxu0 0
    %148 = vmatpush.bf16.msra.mxu0 0
    %149 = vmatpush.bf16.msra.mxu0 0
    %150 = vmatpush.bf16.msra.mxu0 0
    %151 = vmatpush.bf16.msra.mxu0 0
    %152 = vmatpush.bf16.msra.mxu0 0
    %153 = vmatpush.bf16.msra.mxu0 0
    %154 = vmatpush.bf16.msra.mxu0 %v73
    %155 = vmatmul.bf16.gmra.mxu0 %v60
    %v156 = vpop.f32.mrf.mxu0
    %v157 = vadd.f32 %v34, %v156
    %v158 = vpop.f32.mrf.mxu0
    %v159 = vadd.f32 %v39, %v158
    %160 = vdwg.mxu0
    %161 = vmatpush.bf16.msra.mxu0 0
    %162 = vmatpush.bf16.msra.mxu0 0
    %163 = vmatpush.bf16.msra.mxu0 0
    %164 = vmatpush.bf16.msra.mxu0 0
    %165 = vmatpush.bf16.msra.mxu0 0
    %166 = vmatpush.bf16.msra.mxu0 0
    %167 = vmatpush.bf16.msra.mxu0 0
    %168 = vmatpush.bf16.msra.mxu0 %v75
    %169 = vmatmul.bf16.gmra.mxu0 %v60
    %v170 = vpop.f32.mrf.mxu0
    %v171 = vadd.f32 %v34, %v170
    %v172 = vpop.f32.mrf.mxu0
    %v173 = vadd.f32 %v39, %v172
    %174 = vdwg.mxu0
    %v175 = vmax.f32 %v87, %v89
    %v176 = vmax.f32 %v101, %v103
    %v177 = vmax.f32 %v115, %v117
    %v178 = vmax.f32 %v129, %v131
    %v179 = vmax.f32 %v143, %v145
    %v180 = vmax.f32 %v157, %v159
    %v181 = vmax.f32 %v171, %v173
    %v182 = vld [vmem:[%s1] sm:$0xff]
    %v184 = vperm.slane %v182, 0
    %v185 = vperm.slane %v182, 1
    %v186 = vperm.slane %v182, 2
    %v187 = vperm.slane %v182, 3
    %v188 = vperm.slane %v182, 4
    %v189 = vperm.slane %v182, 5
    %v190 = vperm.slane %v182, 6
    %v198 = vmul.f32 %v175, %v184
    %v199 = vmul.f32 %v176, %v185
    %v200 = vmul.f32 %v177, %v186
    %v201 = vmul.f32 %v178, %v187
    %v202 = vmul.f32 %v179, %v188
    %v203 = vmul.f32 %v180, %v189
    %v204 = vmul.f32 %v181, %v190
    %v205 = vpack.c.bf16 %v199, %v198
    %v206 = vpack.c.bf16 %v201, %v200
    %v207 = vpack.c.bf16 %v203, %v202
    %v208 = vpack.c.bf16 %v204, %v204
    %v209 = vld [vmem:[%s4] sm:$0xf]
    %v210 = vld [vmem:[%s4 + $0x4] sm:$0xf]
    %s211 = scalar_lea.vmem %s4, 8
    %v212 = vld [vmem:[%s211] sm:$0xf]
    %v213 = vld [vmem:[%s211 + $0x4] sm:$0xf]
    %v216 = vunpack.c.l.b16 %v212
    %v217 = vunpack.c.l.b16 %v213
    %v218 = vpack.c.b16 %v217, %v216
    %v223 = vunpack.c.l.b16 %v205
    %v224 = vunpack.c.h.b16 %v205
    %v225 = vunpack.c.l.b16 %v206
    %v226 = vunpack.c.h.b16 %v206
    %v227 = vunpack.c.l.b16 %v207
    %v228 = vunpack.c.h.b16 %v207
    %v229 = vunpack.c.l.b16 %v208
    %v230 = vpack.c.b16 %v223, %v223
    %v231 = vpack.c.b16 %v224, %v224
    %v232 = vpack.c.b16 %v225, %v225
    %v233 = vpack.c.b16 %v226, %v226
    %v234 = vpack.c.b16 %v227, %v227
    %v235 = vpack.c.b16 %v228, %v228
    %v236 = vpack.c.b16 %v229, %v229
    %237 = vrot.lane.b32.xlu0 %v230, 127
    %v238 = vpop.permute.xlu0 %237
    %239 = vrot.lane.b32.xlu0 %v231, 127
    %v240 = vpop.permute.xlu0 %239
    %241 = vrot.lane.b32.xlu0 %v232, 127
    %v242 = vpop.permute.xlu0 %241
    %243 = vrot.lane.b32.xlu0 %v233, 127
    %v244 = vpop.permute.xlu0 %243
    %245 = vrot.lane.b32.xlu0 %v234, 127
    %v246 = vpop.permute.xlu0 %245
    %247 = vrot.lane.b32.xlu0 %v235, 127
    %v248 = vpop.permute.xlu0 %247
    %249 = vrot.lane.b32.xlu0 %v236, 127
    %v250 = vpop.permute.xlu0 %249
    %vm251 = vcmask 1039360
    %v252 = vsel %vm251, %v238, %v240
    %v253 = vsel %vm251, %v240, %v242
    %v254 = vsel %vm251, %v242, %v244
    %v255 = vsel %vm251, %v244, %v246
    %v256 = vsel %vm251, %v246, %v248
    %v257 = vsel %vm251, %v248, %v250
    %vm258 = vcmask 64512
    %v260 = vsel %vm258, %v218, 0
    %vm262 = vcmask 1043456
    %v264 = vsel %vm262, %v252, 0
    %v267 = vsel %vm262, %v253, 0
    %v270 = vsel %vm262, %v254, 0
    %v273 = vsel %vm262, %v255, 0
    %v276 = vsel %vm262, %v256, 0
    %v279 = vsel %vm262, %v257, 0
    %281 = vmatpush.bf16.msra.mxu0 0
    %282 = vmatpush.bf16.msra.mxu0 0
    %283 = vmatpush.bf16.msra.mxu0 0
    %284 = vmatpush.bf16.msra.mxu0 0
    %285 = vmatpush.bf16.msra.mxu0 0
    %286 = vmatpush.bf16.msra.mxu0 0
    %287 = vmatpush.bf16.msra.mxu0 0
    %288 = vmatpush.bf16.msra.mxu0 %v264
    %289 = vmatmul.bf16.gmra.mxu0 %v260
    %v290 = vpop.f32.mrf.mxu0
    %v291 = vadd.f32 0.0, %v290
    %v292 = vpop.f32.mrf.mxu0
    %v293 = vadd.f32 0.0, %v292
    %294 = vdwg.mxu0
    %295 = vmatpush.bf16.msra.mxu0 0
    %296 = vmatpush.bf16.msra.mxu0 0
    %297 = vmatpush.bf16.msra.mxu0 0
    %298 = vmatpush.bf16.msra.mxu0 0
    %299 = vmatpush.bf16.msra.mxu0 0
    %300 = vmatpush.bf16.msra.mxu0 0
    %301 = vmatpush.bf16.msra.mxu0 0
    %302 = vmatpush.bf16.msra.mxu0 %v267
    %303 = vmatmul.bf16.gmra.mxu0 %v260
    %v304 = vpop.f32.mrf.mxu0
    %v305 = vadd.f32 0.0, %v304
    %v306 = vpop.f32.mrf.mxu0
    %v307 = vadd.f32 0.0, %v306
    %308 = vdwg.mxu0
    %309 = vmatpush.bf16.msra.mxu0 0
    %310 = vmatpush.bf16.msra.mxu0 0
    %311 = vmatpush.bf16.msra.mxu0 0
    %312 = vmatpush.bf16.msra.mxu0 0
    %313 = vmatpush.bf16.msra.mxu0 0
    %314 = vmatpush.bf16.msra.mxu0 0
    %315 = vmatpush.bf16.msra.mxu0 0
    %316 = vmatpush.bf16.msra.mxu0 %v270
    %317 = vmatmul.bf16.gmra.mxu0 %v260
    %v318 = vpop.f32.mrf.mxu0
    %v319 = vadd.f32 0.0, %v318
    %v320 = vpop.f32.mrf.mxu0
    %v321 = vadd.f32 0.0, %v320
    %322 = vdwg.mxu0
    %323 = vmatpush.bf16.msra.mxu0 0
    %324 = vmatpush.bf16.msra.mxu0 0
    %325 = vmatpush.bf16.msra.mxu0 0
    %326 = vmatpush.bf16.msra.mxu0 0
    %327 = vmatpush.bf16.msra.mxu0 0
    %328 = vmatpush.bf16.msra.mxu0 0
    %329 = vmatpush.bf16.msra.mxu0 0
    %330 = vmatpush.bf16.msra.mxu0 %v273
    %331 = vmatmul.bf16.gmra.mxu0 %v260
    %v332 = vpop.f32.mrf.mxu0
    %v333 = vadd.f32 0.0, %v332
    %v334 = vpop.f32.mrf.mxu0
    %v335 = vadd.f32 0.0, %v334
    %336 = vdwg.mxu0
    %337 = vmatpush.bf16.msra.mxu0 0
    %338 = vmatpush.bf16.msra.mxu0 0
    %339 = vmatpush.bf16.msra.mxu0 0
    %340 = vmatpush.bf16.msra.mxu0 0
    %341 = vmatpush.bf16.msra.mxu0 0
    %342 = vmatpush.bf16.msra.mxu0 0
    %343 = vmatpush.bf16.msra.mxu0 0
    %344 = vmatpush.bf16.msra.mxu0 %v276
    %345 = vmatmul.bf16.gmra.mxu0 %v260
    %v346 = vpop.f32.mrf.mxu0
    %v347 = vadd.f32 0.0, %v346
    %v348 = vpop.f32.mrf.mxu0
    %v349 = vadd.f32 0.0, %v348
    %350 = vdwg.mxu0
    %351 = vmatpush.bf16.msra.mxu0 0
    %352 = vmatpush.bf16.msra.mxu0 0
    %353 = vmatpush.bf16.msra.mxu0 0
    %354 = vmatpush.bf16.msra.mxu0 0
    %355 = vmatpush.bf16.msra.mxu0 0
    %356 = vmatpush.bf16.msra.mxu0 0
    %357 = vmatpush.bf16.msra.mxu0 0
    %358 = vmatpush.bf16.msra.mxu0 %v279
    %359 = vmatmul.bf16.gmra.mxu0 %v260
    %v360 = vpop.f32.mrf.mxu0
    %v361 = vadd.f32 0.0, %v360
    %v362 = vpop.f32.mrf.mxu0
    %v363 = vadd.f32 0.0, %v362
    %364 = vdwg.mxu0
    %v367 = vunpack.c.l.b16 %v209
    %v368 = vunpack.c.l.b16 %v210
    %v369 = vpack.c.b16 %v368, %v367
    %v371 = vsel %vm258, %v369, 0
    %v374 = vsel %vm262, %v230, 0
    %v377 = vsel %vm262, %v231, 0
    %v380 = vsel %vm262, %v232, 0
    %v383 = vsel %vm262, %v233, 0
    %v386 = vsel %vm262, %v234, 0
    %v389 = vsel %vm262, %v235, 0
    %391 = vmatpush.bf16.msra.mxu0 0
    %392 = vmatpush.bf16.msra.mxu0 0
    %393 = vmatpush.bf16.msra.mxu0 0
    %394 = vmatpush.bf16.msra.mxu0 0
    %395 = vmatpush.bf16.msra.mxu0 0
    %396 = vmatpush.bf16.msra.mxu0 0
    %397 = vmatpush.bf16.msra.mxu0 0
    %398 = vmatpush.bf16.msra.mxu0 %v374
    %399 = vmatmul.bf16.gmra.mxu0 %v371
    %v400 = vpop.f32.mrf.mxu0
    %v401 = vadd.f32 %v291, %v400
    %v402 = vpop.f32.mrf.mxu0
    %v403 = vadd.f32 %v293, %v402
    %404 = vdwg.mxu0
    %405 = vmatpush.bf16.msra.mxu0 0
    %406 = vmatpush.bf16.msra.mxu0 0
    %407 = vmatpush.bf16.msra.mxu0 0
    %408 = vmatpush.bf16.msra.mxu0 0
    %409 = vmatpush.bf16.msra.mxu0 0
    %410 = vmatpush.bf16.msra.mxu0 0
    %411 = vmatpush.bf16.msra.mxu0 0
    %412 = vmatpush.bf16.msra.mxu0 %v377
    %413 = vmatmul.bf16.gmra.mxu0 %v371
    %v414 = vpop.f32.mrf.mxu0
    %v415 = vadd.f32 %v305, %v414
    %v416 = vpop.f32.mrf.mxu0
    %v417 = vadd.f32 %v307, %v416
    %418 = vdwg.mxu0
    %419 = vmatpush.bf16.msra.mxu0 0
    %420 = vmatpush.bf16.msra.mxu0 0
    %421 = vmatpush.bf16.msra.mxu0 0
    %422 = vmatpush.bf16.msra.mxu0 0
    %423 = vmatpush.bf16.msra.mxu0 0
    %424 = vmatpush.bf16.msra.mxu0 0
    %425 = vmatpush.bf16.msra.mxu0 0
    %426 = vmatpush.bf16.msra.mxu0 %v380
    %427 = vmatmul.bf16.gmra.mxu0 %v371
    %v428 = vpop.f32.mrf.mxu0
    %v429 = vadd.f32 %v319, %v428
    %v430 = vpop.f32.mrf.mxu0
    %v431 = vadd.f32 %v321, %v430
    %432 = vdwg.mxu0
    %433 = vmatpush.bf16.msra.mxu0 0
    %434 = vmatpush.bf16.msra.mxu0 0
    %435 = vmatpush.bf16.msra.mxu0 0
    %436 = vmatpush.bf16.msra.mxu0 0
    %437 = vmatpush.bf16.msra.mxu0 0
    %438 = vmatpush.bf16.msra.mxu0 0
    %439 = vmatpush.bf16.msra.mxu0 0
    %440 = vmatpush.bf16.msra.mxu0 %v383
    %441 = vmatmul.bf16.gmra.mxu0 %v371
    %v442 = vpop.f32.mrf.mxu0
    %v443 = vadd.f32 %v333, %v442
    %v444 = vpop.f32.mrf.mxu0
    %v445 = vadd.f32 %v335, %v444
    %446 = vdwg.mxu0
    %447 = vmatpush.bf16.msra.mxu0 0
    %448 = vmatpush.bf16.msra.mxu0 0
    %449 = vmatpush.bf16.msra.mxu0 0
    %450 = vmatpush.bf16.msra.mxu0 0
    %451 = vmatpush.bf16.msra.mxu0 0
    %452 = vmatpush.bf16.msra.mxu0 0
    %453 = vmatpush.bf16.msra.mxu0 0
    %454 = vmatpush.bf16.msra.mxu0 %v386
    %455 = vmatmul.bf16.gmra.mxu0 %v371
    %v456 = vpop.f32.mrf.mxu0
    %v457 = vadd.f32 %v347, %v456
    %v458 = vpop.f32.mrf.mxu0
    %v459 = vadd.f32 %v349, %v458
    %460 = vdwg.mxu0
    %461 = vmatpush.bf16.msra.mxu0 0
    %462 = vmatpush.bf16.msra.mxu0 0
    %463 = vmatpush.bf16.msra.mxu0 0
    %464 = vmatpush.bf16.msra.mxu0 0
    %465 = vmatpush.bf16.msra.mxu0 0
    %466 = vmatpush.bf16.msra.mxu0 0
    %467 = vmatpush.bf16.msra.mxu0 0
    %468 = vmatpush.bf16.msra.mxu0 %v389
    %469 = vmatmul.bf16.gmra.mxu0 %v371
    %v470 = vpop.f32.mrf.mxu0
    %v471 = vadd.f32 %v361, %v470
    %v472 = vpop.f32.mrf.mxu0
    %v473 = vadd.f32 %v363, %v472
    %474 = vdwg.mxu0
    %s475 = scalar_lea.vmem %s4, 16
    %v476 = vld [vmem:[%s475] sm:$0xf]
    %v477 = vld [vmem:[%s475 + $0x4] sm:$0xf]
    %v480 = vunpack.c.l.b16 %v476
    %v481 = vunpack.c.l.b16 %v477
    %v482 = vpack.c.b16 %v481, %v480
    %483 = vrot.lane.b32.xlu0 %v230, 126
    %v484 = vpop.permute.xlu0 %483
    %485 = vrot.lane.b32.xlu0 %v231, 126
    %v486 = vpop.permute.xlu0 %485
    %487 = vrot.lane.b32.xlu0 %v232, 126
    %v488 = vpop.permute.xlu0 %487
    %489 = vrot.lane.b32.xlu0 %v233, 126
    %v490 = vpop.permute.xlu0 %489
    %491 = vrot.lane.b32.xlu0 %v234, 126
    %v492 = vpop.permute.xlu0 %491
    %493 = vrot.lane.b32.xlu0 %v235, 126
    %v494 = vpop.permute.xlu0 %493
    %495 = vrot.lane.b32.xlu0 %v236, 126
    %v496 = vpop.permute.xlu0 %495
    %vm497 = vcmask 1031168
    %v498 = vsel %vm497, %v484, %v486
    %v499 = vsel %vm497, %v486, %v488
    %v500 = vsel %vm497, %v488, %v490
    %v501 = vsel %vm497, %v490, %v492
    %v502 = vsel %vm497, %v492, %v494
    %v503 = vsel %vm497, %v494, %v496
    %v505 = vsel %vm258, %v482, 0
    %v508 = vsel %vm262, %v498, 0
    %v511 = vsel %vm262, %v499, 0
    %v514 = vsel %vm262, %v500, 0
    %v517 = vsel %vm262, %v501, 0
    %v520 = vsel %vm262, %v502, 0
    %v523 = vsel %vm262, %v503, 0
    %525 = vmatpush.bf16.msra.mxu0 0
    %526 = vmatpush.bf16.msra.mxu0 0
    %527 = vmatpush.bf16.msra.mxu0 0
    %528 = vmatpush.bf16.msra.mxu0 0
    %529 = vmatpush.bf16.msra.mxu0 0
    %530 = vmatpush.bf16.msra.mxu0 0
    %531 = vmatpush.bf16.msra.mxu0 0
    %532 = vmatpush.bf16.msra.mxu0 %v508
    %533 = vmatmul.bf16.gmra.mxu0 %v505
    %v534 = vpop.f32.mrf.mxu0
    %v535 = vadd.f32 0.0, %v534
    %v536 = vpop.f32.mrf.mxu0
    %v537 = vadd.f32 0.0, %v536
    %538 = vdwg.mxu0
    %539 = vmatpush.bf16.msra.mxu0 0
    %540 = vmatpush.bf16.msra.mxu0 0
    %541 = vmatpush.bf16.msra.mxu0 0
    %542 = vmatpush.bf16.msra.mxu0 0
    %543 = vmatpush.bf16.msra.mxu0 0
    %544 = vmatpush.bf16.msra.mxu0 0
    %545 = vmatpush.bf16.msra.mxu0 0
    %546 = vmatpush.bf16.msra.mxu0 %v511
    %547 = vmatmul.bf16.gmra.mxu0 %v505
    %v548 = vpop.f32.mrf.mxu0
    %v549 = vadd.f32 0.0, %v548
    %v550 = vpop.f32.mrf.mxu0
    %v551 = vadd.f32 0.0, %v550
    %552 = vdwg.mxu0
    %553 = vmatpush.bf16.msra.mxu0 0
    %554 = vmatpush.bf16.msra.mxu0 0
    %555 = vmatpush.bf16.msra.mxu0 0
    %556 = vmatpush.bf16.msra.mxu0 0
    %557 = vmatpush.bf16.msra.mxu0 0
    %558 = vmatpush.bf16.msra.mxu0 0
    %559 = vmatpush.bf16.msra.mxu0 0
    %560 = vmatpush.bf16.msra.mxu0 %v514
    %561 = vmatmul.bf16.gmra.mxu0 %v505
    %v562 = vpop.f32.mrf.mxu0
    %v563 = vadd.f32 0.0, %v562
    %v564 = vpop.f32.mrf.mxu0
    %v565 = vadd.f32 0.0, %v564
    %566 = vdwg.mxu0
    %567 = vmatpush.bf16.msra.mxu0 0
    %568 = vmatpush.bf16.msra.mxu0 0
    %569 = vmatpush.bf16.msra.mxu0 0
    %570 = vmatpush.bf16.msra.mxu0 0
    %571 = vmatpush.bf16.msra.mxu0 0
    %572 = vmatpush.bf16.msra.mxu0 0
    %573 = vmatpush.bf16.msra.mxu0 0
    %574 = vmatpush.bf16.msra.mxu0 %v517
    %575 = vmatmul.bf16.gmra.mxu0 %v505
    %v576 = vpop.f32.mrf.mxu0
    %v577 = vadd.f32 0.0, %v576
    %v578 = vpop.f32.mrf.mxu0
    %v579 = vadd.f32 0.0, %v578
    %580 = vdwg.mxu0
    %581 = vmatpush.bf16.msra.mxu0 0
    %582 = vmatpush.bf16.msra.mxu0 0
    %583 = vmatpush.bf16.msra.mxu0 0
    %584 = vmatpush.bf16.msra.mxu0 0
    %585 = vmatpush.bf16.msra.mxu0 0
    %586 = vmatpush.bf16.msra.mxu0 0
    %587 = vmatpush.bf16.msra.mxu0 0
    %588 = vmatpush.bf16.msra.mxu0 %v520
    %589 = vmatmul.bf16.gmra.mxu0 %v505
    %v590 = vpop.f32.mrf.mxu0
    %v591 = vadd.f32 0.0, %v590
    %v592 = vpop.f32.mrf.mxu0
    %v593 = vadd.f32 0.0, %v592
    %594 = vdwg.mxu0
    %595 = vmatpush.bf16.msra.mxu0 0
    %596 = vmatpush.bf16.msra.mxu0 0
    %597 = vmatpush.bf16.msra.mxu0 0
    %598 = vmatpush.bf16.msra.mxu0 0
    %599 = vmatpush.bf16.msra.mxu0 0
    %600 = vmatpush.bf16.msra.mxu0 0
    %601 = vmatpush.bf16.msra.mxu0 0
    %602 = vmatpush.bf16.msra.mxu0 %v523
    %603 = vmatmul.bf16.gmra.mxu0 %v505
    %v604 = vpop.f32.mrf.mxu0
    %v605 = vadd.f32 0.0, %v604
    %v606 = vpop.f32.mrf.mxu0
    %v607 = vadd.f32 0.0, %v606
    %608 = vdwg.mxu0
    %v609 = vadd.f32 %v401, %v535
    %v610 = vadd.f32 %v415, %v549
    %v611 = vadd.f32 %v429, %v563
    %v612 = vadd.f32 %v443, %v577
    %v613 = vadd.f32 %v457, %v591
    %v614 = vadd.f32 %v471, %v605
    %v615 = vadd.f32 %v403, %v537
    %v616 = vadd.f32 %v417, %v551
    %v617 = vadd.f32 %v431, %v565
    %v618 = vadd.f32 %v445, %v579
    %v619 = vadd.f32 %v459, %v593
    %v620 = vadd.f32 %v473, %v607
    %s621 = scalar_lea.vmem %s4, 24
    %v622 = vld [vmem:[%s621] sm:$0xf]
    %v623 = vld [vmem:[%s621 + $0x4] sm:$0xf]
    %v626 = vunpack.c.l.b16 %v622
    %v627 = vunpack.c.l.b16 %v623
    %v628 = vpack.c.b16 %v627, %v626
    %629 = vrot.lane.b32.xlu0 %v230, 110
    %v630 = vpop.permute.xlu0 %629
    %631 = vrot.lane.b32.xlu0 %v231, 110
    %v632 = vpop.permute.xlu0 %631
    %633 = vrot.lane.b32.xlu0 %v232, 110
    %v634 = vpop.permute.xlu0 %633
    %635 = vrot.lane.b32.xlu0 %v233, 110
    %v636 = vpop.permute.xlu0 %635
    %637 = vrot.lane.b32.xlu0 %v234, 110
    %v638 = vpop.permute.xlu0 %637
    %639 = vrot.lane.b32.xlu0 %v235, 110
    %v640 = vpop.permute.xlu0 %639
    %641 = vrot.lane.b32.xlu0 %v236, 110
    %v642 = vpop.permute.xlu0 %641
    %vm643 = vcmask 900096
    %v644 = vsel %vm643, %v630, %v632
    %v645 = vsel %vm643, %v632, %v634
    %v646 = vsel %vm643, %v634, %v636
    %v647 = vsel %vm643, %v636, %v638
    %v648 = vsel %vm643, %v638, %v640
    %v649 = vsel %vm643, %v640, %v642
    %v651 = vsel %vm258, %v628, 0
    %v654 = vsel %vm262, %v644, 0
    %v657 = vsel %vm262, %v645, 0
    %v660 = vsel %vm262, %v646, 0
    %v663 = vsel %vm262, %v647, 0
    %v666 = vsel %vm262, %v648, 0
    %v669 = vsel %vm262, %v649, 0
    %671 = vmatpush.bf16.msra.mxu0 0
    %672 = vmatpush.bf16.msra.mxu0 0
    %673 = vmatpush.bf16.msra.mxu0 0
    %674 = vmatpush.bf16.msra.mxu0 0
    %675 = vmatpush.bf16.msra.mxu0 0
    %676 = vmatpush.bf16.msra.mxu0 0
    %677 = vmatpush.bf16.msra.mxu0 0
    %678 = vmatpush.bf16.msra.mxu0 %v654
    %679 = vmatmul.bf16.gmra.mxu0 %v651
    %v680 = vpop.f32.mrf.mxu0
    %v681 = vadd.f32 0.0, %v680
    %v682 = vpop.f32.mrf.mxu0
    %v683 = vadd.f32 0.0, %v682
    %684 = vdwg.mxu0
    %685 = vmatpush.bf16.msra.mxu0 0
    %686 = vmatpush.bf16.msra.mxu0 0
    %687 = vmatpush.bf16.msra.mxu0 0
    %688 = vmatpush.bf16.msra.mxu0 0
    %689 = vmatpush.bf16.msra.mxu0 0
    %690 = vmatpush.bf16.msra.mxu0 0
    %691 = vmatpush.bf16.msra.mxu0 0
    %692 = vmatpush.bf16.msra.mxu0 %v657
    %693 = vmatmul.bf16.gmra.mxu0 %v651
    %v694 = vpop.f32.mrf.mxu0
    %v695 = vadd.f32 0.0, %v694
    %v696 = vpop.f32.mrf.mxu0
    %v697 = vadd.f32 0.0, %v696
    %698 = vdwg.mxu0
    %699 = vmatpush.bf16.msra.mxu0 0
    %700 = vmatpush.bf16.msra.mxu0 0
    %701 = vmatpush.bf16.msra.mxu0 0
    %702 = vmatpush.bf16.msra.mxu0 0
    %703 = vmatpush.bf16.msra.mxu0 0
    %704 = vmatpush.bf16.msra.mxu0 0
    %705 = vmatpush.bf16.msra.mxu0 0
    %706 = vmatpush.bf16.msra.mxu0 %v660
    %707 = vmatmul.bf16.gmra.mxu0 %v651
    %v708 = vpop.f32.mrf.mxu0
    %v709 = vadd.f32 0.0, %v708
    %v710 = vpop.f32.mrf.mxu0
    %v711 = vadd.f32 0.0, %v710
    %712 = vdwg.mxu0
    %713 = vmatpush.bf16.msra.mxu0 0
    %714 = vmatpush.bf16.msra.mxu0 0
    %715 = vmatpush.bf16.msra.mxu0 0
    %716 = vmatpush.bf16.msra.mxu0 0
    %717 = vmatpush.bf16.msra.mxu0 0
    %718 = vmatpush.bf16.msra.mxu0 0
    %719 = vmatpush.bf16.msra.mxu0 0
    %720 = vmatpush.bf16.msra.mxu0 %v663
    %721 = vmatmul.bf16.gmra.mxu0 %v651
    %v722 = vpop.f32.mrf.mxu0
    %v723 = vadd.f32 0.0, %v722
    %v724 = vpop.f32.mrf.mxu0
    %v725 = vadd.f32 0.0, %v724
    %726 = vdwg.mxu0
    %727 = vmatpush.bf16.msra.mxu0 0
    %728 = vmatpush.bf16.msra.mxu0 0
    %729 = vmatpush.bf16.msra.mxu0 0
    %730 = vmatpush.bf16.msra.mxu0 0
    %731 = vmatpush.bf16.msra.mxu0 0
    %732 = vmatpush.bf16.msra.mxu0 0
    %733 = vmatpush.bf16.msra.mxu0 0
    %734 = vmatpush.bf16.msra.mxu0 %v666
    %735 = vmatmul.bf16.gmra.mxu0 %v651
    %v736 = vpop.f32.mrf.mxu0
    %v737 = vadd.f32 0.0, %v736
    %v738 = vpop.f32.mrf.mxu0
    %v739 = vadd.f32 0.0, %v738
    %740 = vdwg.mxu0
    %741 = vmatpush.bf16.msra.mxu0 0
    %742 = vmatpush.bf16.msra.mxu0 0
    %743 = vmatpush.bf16.msra.mxu0 0
    %744 = vmatpush.bf16.msra.mxu0 0
    %745 = vmatpush.bf16.msra.mxu0 0
    %746 = vmatpush.bf16.msra.mxu0 0
    %747 = vmatpush.bf16.msra.mxu0 0
    %748 = vmatpush.bf16.msra.mxu0 %v669
    %749 = vmatmul.bf16.gmra.mxu0 %v651
    %v750 = vpop.f32.mrf.mxu0
    %v751 = vadd.f32 0.0, %v750
    %v752 = vpop.f32.mrf.mxu0
    %v753 = vadd.f32 0.0, %v752
    %754 = vdwg.mxu0
    %v755 = vadd.f32 %v609, %v681
    %v756 = vadd.f32 %v610, %v695
    %v757 = vadd.f32 %v611, %v709
    %v758 = vadd.f32 %v612, %v723
    %v759 = vadd.f32 %v613, %v737
    %v760 = vadd.f32 %v614, %v751
    %v761 = vadd.f32 %v615, %v683
    %v762 = vadd.f32 %v616, %v697
    %v763 = vadd.f32 %v617, %v711
    %v764 = vadd.f32 %v618, %v725
    %v765 = vadd.f32 %v619, %v739
    %v766 = vadd.f32 %v620, %v753
    %s767 = scalar_lea.vmem %s4, 32
    %v768 = vld [vmem:[%s767] sm:$0xf]
    %v769 = vld [vmem:[%s767 + $0x4] sm:$0xf]
    %v772 = vunpack.c.l.b16 %v768
    %v773 = vunpack.c.l.b16 %v769
    %v774 = vpack.c.b16 %v773, %v772
    %775 = vrot.lane.b32.xlu0 %v230, 109
    %v776 = vpop.permute.xlu0 %775
    %777 = vrot.lane.b32.xlu0 %v231, 109
    %v778 = vpop.permute.xlu0 %777
    %779 = vrot.lane.b32.xlu0 %v232, 109
    %v780 = vpop.permute.xlu0 %779
    %781 = vrot.lane.b32.xlu0 %v233, 109
    %v782 = vpop.permute.xlu0 %781
    %783 = vrot.lane.b32.xlu0 %v234, 109
    %v784 = vpop.permute.xlu0 %783
    %785 = vrot.lane.b32.xlu0 %v235, 109
    %v786 = vpop.permute.xlu0 %785
    %787 = vrot.lane.b32.xlu0 %v236, 109
    %v788 = vpop.permute.xlu0 %787
    %vm789 = vcmask 891904
    %v790 = vsel %vm789, %v776, %v778
    %v791 = vsel %vm789, %v778, %v780
    %v792 = vsel %vm789, %v780, %v782
    %v793 = vsel %vm789, %v782, %v784
    %v794 = vsel %vm789, %v784, %v786
    %v795 = vsel %vm789, %v786, %v788
    %v797 = vsel %vm258, %v774, 0
    %v800 = vsel %vm262, %v790, 0
    %v803 = vsel %vm262, %v791, 0
    %v806 = vsel %vm262, %v792, 0
    %v809 = vsel %vm262, %v793, 0
    %v812 = vsel %vm262, %v794, 0
    %v815 = vsel %vm262, %v795, 0
    %817 = vmatpush.bf16.msra.mxu0 0
    %818 = vmatpush.bf16.msra.mxu0 0
    %819 = vmatpush.bf16.msra.mxu0 0
    %820 = vmatpush.bf16.msra.mxu0 0
    %821 = vmatpush.bf16.msra.mxu0 0
    %822 = vmatpush.bf16.msra.mxu0 0
    %823 = vmatpush.bf16.msra.mxu0 0
    %824 = vmatpush.bf16.msra.mxu0 %v800
    %825 = vmatmul.bf16.gmra.mxu0 %v797
    %v826 = vpop.f32.mrf.mxu0
    %v827 = vadd.f32 0.0, %v826
    %v828 = vpop.f32.mrf.mxu0
    %v829 = vadd.f32 0.0, %v828
    %830 = vdwg.mxu0
    %831 = vmatpush.bf16.msra.mxu0 0
    %832 = vmatpush.bf16.msra.mxu0 0
    %833 = vmatpush.bf16.msra.mxu0 0
    %834 = vmatpush.bf16.msra.mxu0 0
    %835 = vmatpush.bf16.msra.mxu0 0
    %836 = vmatpush.bf16.msra.mxu0 0
    %837 = vmatpush.bf16.msra.mxu0 0
    %838 = vmatpush.bf16.msra.mxu0 %v803
    %839 = vmatmul.bf16.gmra.mxu0 %v797
    %v840 = vpop.f32.mrf.mxu0
    %v841 = vadd.f32 0.0, %v840
    %v842 = vpop.f32.mrf.mxu0
    %v843 = vadd.f32 0.0, %v842
    %844 = vdwg.mxu0
    %845 = vmatpush.bf16.msra.mxu0 0
    %846 = vmatpush.bf16.msra.mxu0 0
    %847 = vmatpush.bf16.msra.mxu0 0
    %848 = vmatpush.bf16.msra.mxu0 0
    %849 = vmatpush.bf16.msra.mxu0 0
    %850 = vmatpush.bf16.msra.mxu0 0
    %851 = vmatpush.bf16.msra.mxu0 0
    %852 = vmatpush.bf16.msra.mxu0 %v806
    %853 = vmatmul.bf16.gmra.mxu0 %v797
    %v854 = vpop.f32.mrf.mxu0
    %v855 = vadd.f32 0.0, %v854
    %v856 = vpop.f32.mrf.mxu0
    %v857 = vadd.f32 0.0, %v856
    %858 = vdwg.mxu0
    %859 = vmatpush.bf16.msra.mxu0 0
    %860 = vmatpush.bf16.msra.mxu0 0
    %861 = vmatpush.bf16.msra.mxu0 0
    %862 = vmatpush.bf16.msra.mxu0 0
    %863 = vmatpush.bf16.msra.mxu0 0
    %864 = vmatpush.bf16.msra.mxu0 0
    %865 = vmatpush.bf16.msra.mxu0 0
    %866 = vmatpush.bf16.msra.mxu0 %v809
    %867 = vmatmul.bf16.gmra.mxu0 %v797
    %v868 = vpop.f32.mrf.mxu0
    %v869 = vadd.f32 0.0, %v868
    %v870 = vpop.f32.mrf.mxu0
    %v871 = vadd.f32 0.0, %v870
    %872 = vdwg.mxu0
    %873 = vmatpush.bf16.msra.mxu0 0
    %874 = vmatpush.bf16.msra.mxu0 0
    %875 = vmatpush.bf16.msra.mxu0 0
    %876 = vmatpush.bf16.msra.mxu0 0
    %877 = vmatpush.bf16.msra.mxu0 0
    %878 = vmatpush.bf16.msra.mxu0 0
    %879 = vmatpush.bf16.msra.mxu0 0
    %880 = vmatpush.bf16.msra.mxu0 %v812
    %881 = vmatmul.bf16.gmra.mxu0 %v797
    %v882 = vpop.f32.mrf.mxu0
    %v883 = vadd.f32 0.0, %v882
    %v884 = vpop.f32.mrf.mxu0
    %v885 = vadd.f32 0.0, %v884
    %886 = vdwg.mxu0
    %887 = vmatpush.bf16.msra.mxu0 0
    %888 = vmatpush.bf16.msra.mxu0 0
    %889 = vmatpush.bf16.msra.mxu0 0
    %890 = vmatpush.bf16.msra.mxu0 0
    %891 = vmatpush.bf16.msra.mxu0 0
    %892 = vmatpush.bf16.msra.mxu0 0
    %893 = vmatpush.bf16.msra.mxu0 0
    %894 = vmatpush.bf16.msra.mxu0 %v815
    %895 = vmatmul.bf16.gmra.mxu0 %v797
    %v896 = vpop.f32.mrf.mxu0
    %v897 = vadd.f32 0.0, %v896
    %v898 = vpop.f32.mrf.mxu0
    %v899 = vadd.f32 0.0, %v898
    %900 = vdwg.mxu0
    %v901 = vadd.f32 %v755, %v827
    %v902 = vadd.f32 %v756, %v841
    %v903 = vadd.f32 %v757, %v855
    %v904 = vadd.f32 %v758, %v869
    %v905 = vadd.f32 %v759, %v883
    %v906 = vadd.f32 %v760, %v897
    %v907 = vadd.f32 %v761, %v829
    %v908 = vadd.f32 %v762, %v843
    %v909 = vadd.f32 %v763, %v857
    %v910 = vadd.f32 %v764, %v871
    %v911 = vadd.f32 %v765, %v885
    %v912 = vadd.f32 %v766, %v899
    %s913 = scalar_lea.vmem %s4, 40
    %v914 = vld [vmem:[%s913] sm:$0xf]
    %v915 = vld [vmem:[%s913 + $0x4] sm:$0xf]
    %v918 = vunpack.c.l.b16 %v914
    %v919 = vunpack.c.l.b16 %v915
    %v920 = vpack.c.b16 %v919, %v918
    %921 = vrot.lane.b32.xlu0 %v230, 108
    %v922 = vpop.permute.xlu0 %921
    %923 = vrot.lane.b32.xlu0 %v231, 108
    %v924 = vpop.permute.xlu0 %923
    %925 = vrot.lane.b32.xlu0 %v232, 108
    %v926 = vpop.permute.xlu0 %925
    %927 = vrot.lane.b32.xlu0 %v233, 108
    %v928 = vpop.permute.xlu0 %927
    %929 = vrot.lane.b32.xlu0 %v234, 108
    %v930 = vpop.permute.xlu0 %929
    %931 = vrot.lane.b32.xlu0 %v235, 108
    %v932 = vpop.permute.xlu0 %931
    %933 = vrot.lane.b32.xlu0 %v236, 108
    %v934 = vpop.permute.xlu0 %933
    %vm935 = vcmask 883712
    %v936 = vsel %vm935, %v922, %v924
    %v937 = vsel %vm935, %v924, %v926
    %v938 = vsel %vm935, %v926, %v928
    %v939 = vsel %vm935, %v928, %v930
    %v940 = vsel %vm935, %v930, %v932
    %v941 = vsel %vm935, %v932, %v934
    %v943 = vsel %vm258, %v920, 0
    %v946 = vsel %vm262, %v936, 0
    %v949 = vsel %vm262, %v937, 0
    %v952 = vsel %vm262, %v938, 0
    %v955 = vsel %vm262, %v939, 0
    %v958 = vsel %vm262, %v940, 0
    %v961 = vsel %vm262, %v941, 0
    %963 = vmatpush.bf16.msra.mxu0 0
    %964 = vmatpush.bf16.msra.mxu0 0
    %965 = vmatpush.bf16.msra.mxu0 0
    %966 = vmatpush.bf16.msra.mxu0 0
    %967 = vmatpush.bf16.msra.mxu0 0
    %968 = vmatpush.bf16.msra.mxu0 0
    %969 = vmatpush.bf16.msra.mxu0 0
    %970 = vmatpush.bf16.msra.mxu0 %v946
    %971 = vmatmul.bf16.gmra.mxu0 %v943
    %v972 = vpop.f32.mrf.mxu0
    %v973 = vadd.f32 0.0, %v972
    %v974 = vpop.f32.mrf.mxu0
    %v975 = vadd.f32 0.0, %v974
    %976 = vdwg.mxu0
    %977 = vmatpush.bf16.msra.mxu0 0
    %978 = vmatpush.bf16.msra.mxu0 0
    %979 = vmatpush.bf16.msra.mxu0 0
    %980 = vmatpush.bf16.msra.mxu0 0
    %981 = vmatpush.bf16.msra.mxu0 0
    %982 = vmatpush.bf16.msra.mxu0 0
    %983 = vmatpush.bf16.msra.mxu0 0
    %984 = vmatpush.bf16.msra.mxu0 %v949
    %985 = vmatmul.bf16.gmra.mxu0 %v943
    %v986 = vpop.f32.mrf.mxu0
    %v987 = vadd.f32 0.0, %v986
    %v988 = vpop.f32.mrf.mxu0
    %v989 = vadd.f32 0.0, %v988
    %990 = vdwg.mxu0
    %991 = vmatpush.bf16.msra.mxu0 0
    %992 = vmatpush.bf16.msra.mxu0 0
    %993 = vmatpush.bf16.msra.mxu0 0
    %994 = vmatpush.bf16.msra.mxu0 0
    %995 = vmatpush.bf16.msra.mxu0 0
    %996 = vmatpush.bf16.msra.mxu0 0
    %997 = vmatpush.bf16.msra.mxu0 0
    %998 = vmatpush.bf16.msra.mxu0 %v952
    %999 = vmatmul.bf16.gmra.mxu0 %v943
    %v1000 = vpop.f32.mrf.mxu0
    %v1001 = vadd.f32 0.0, %v1000
    %v1002 = vpop.f32.mrf.mxu0
    %v1003 = vadd.f32 0.0, %v1002
    %1004 = vdwg.mxu0
    %1005 = vmatpush.bf16.msra.mxu0 0
    %1006 = vmatpush.bf16.msra.mxu0 0
    %1007 = vmatpush.bf16.msra.mxu0 0
    %1008 = vmatpush.bf16.msra.mxu0 0
    %1009 = vmatpush.bf16.msra.mxu0 0
    %1010 = vmatpush.bf16.msra.mxu0 0
    %1011 = vmatpush.bf16.msra.mxu0 0
    %1012 = vmatpush.bf16.msra.mxu0 %v955
    %1013 = vmatmul.bf16.gmra.mxu0 %v943
    %v1014 = vpop.f32.mrf.mxu0
    %v1015 = vadd.f32 0.0, %v1014
    %v1016 = vpop.f32.mrf.mxu0
    %v1017 = vadd.f32 0.0, %v1016
    %1018 = vdwg.mxu0
    %1019 = vmatpush.bf16.msra.mxu0 0
    %1020 = vmatpush.bf16.msra.mxu0 0
    %1021 = vmatpush.bf16.msra.mxu0 0
    %1022 = vmatpush.bf16.msra.mxu0 0
    %1023 = vmatpush.bf16.msra.mxu0 0
    %1024 = vmatpush.bf16.msra.mxu0 0
    %1025 = vmatpush.bf16.msra.mxu0 0
    %1026 = vmatpush.bf16.msra.mxu0 %v958
    %1027 = vmatmul.bf16.gmra.mxu0 %v943
    %v1028 = vpop.f32.mrf.mxu0
    %v1029 = vadd.f32 0.0, %v1028
    %v1030 = vpop.f32.mrf.mxu0
    %v1031 = vadd.f32 0.0, %v1030
    %1032 = vdwg.mxu0
    %1033 = vmatpush.bf16.msra.mxu0 0
    %1034 = vmatpush.bf16.msra.mxu0 0
    %1035 = vmatpush.bf16.msra.mxu0 0
    %1036 = vmatpush.bf16.msra.mxu0 0
    %1037 = vmatpush.bf16.msra.mxu0 0
    %1038 = vmatpush.bf16.msra.mxu0 0
    %1039 = vmatpush.bf16.msra.mxu0 0
    %1040 = vmatpush.bf16.msra.mxu0 %v961
    %1041 = vmatmul.bf16.gmra.mxu0 %v943
    %v1042 = vpop.f32.mrf.mxu0
    %v1043 = vadd.f32 0.0, %v1042
    %v1044 = vpop.f32.mrf.mxu0
    %v1045 = vadd.f32 0.0, %v1044
    %1046 = vdwg.mxu0
    %v1047 = vadd.f32 %v901, %v973
    %v1048 = vadd.f32 %v902, %v987
    %v1049 = vadd.f32 %v903, %v1001
    %v1050 = vadd.f32 %v904, %v1015
    %v1051 = vadd.f32 %v905, %v1029
    %v1052 = vadd.f32 %v906, %v1043
    %v1053 = vadd.f32 %v907, %v975
    %v1054 = vadd.f32 %v908, %v989
    %v1055 = vadd.f32 %v909, %v1003
    %v1056 = vadd.f32 %v910, %v1017
    %v1057 = vadd.f32 %v911, %v1031
    %v1058 = vadd.f32 %v912, %v1045
    %s1059 = scalar_lea.vmem %s4, 48
    %v1060 = vld [vmem:[%s1059] sm:$0xf]
    %v1061 = vld [vmem:[%s1059 + $0x4] sm:$0xf]
    %v1064 = vunpack.c.l.b16 %v1060
    %v1065 = vunpack.c.l.b16 %v1061
    %v1066 = vpack.c.b16 %v1065, %v1064
    %1067 = vrot.lane.b32.xlu0 %v230, 92
    %v1068 = vpop.permute.xlu0 %1067
    %1069 = vrot.lane.b32.xlu0 %v231, 92
    %v1070 = vpop.permute.xlu0 %1069
    %1071 = vrot.lane.b32.xlu0 %v232, 92
    %v1072 = vpop.permute.xlu0 %1071
    %1073 = vrot.lane.b32.xlu0 %v233, 92
    %v1074 = vpop.permute.xlu0 %1073
    %1075 = vrot.lane.b32.xlu0 %v234, 92
    %v1076 = vpop.permute.xlu0 %1075
    %1077 = vrot.lane.b32.xlu0 %v235, 92
    %v1078 = vpop.permute.xlu0 %1077
    %1079 = vrot.lane.b32.xlu0 %v236, 92
    %v1080 = vpop.permute.xlu0 %1079
    %vm1081 = vcmask 752640
    %v1082 = vsel %vm1081, %v1068, %v1070
    %v1083 = vsel %vm1081, %v1070, %v1072
    %v1084 = vsel %vm1081, %v1072, %v1074
    %v1085 = vsel %vm1081, %v1074, %v1076
    %v1086 = vsel %vm1081, %v1076, %v1078
    %v1087 = vsel %vm1081, %v1078, %v1080
    %v1089 = vsel %vm258, %v1066, 0
    %v1092 = vsel %vm262, %v1082, 0
    %v1095 = vsel %vm262, %v1083, 0
    %v1098 = vsel %vm262, %v1084, 0
    %v1101 = vsel %vm262, %v1085, 0
    %v1104 = vsel %vm262, %v1086, 0
    %v1107 = vsel %vm262, %v1087, 0
    %1109 = vmatpush.bf16.msra.mxu0 0
    %1110 = vmatpush.bf16.msra.mxu0 0
    %1111 = vmatpush.bf16.msra.mxu0 0
    %1112 = vmatpush.bf16.msra.mxu0 0
    %1113 = vmatpush.bf16.msra.mxu0 0
    %1114 = vmatpush.bf16.msra.mxu0 0
    %1115 = vmatpush.bf16.msra.mxu0 0
    %1116 = vmatpush.bf16.msra.mxu0 %v1092
    %1117 = vmatmul.bf16.gmra.mxu0 %v1089
    %v1118 = vpop.f32.mrf.mxu0
    %v1119 = vadd.f32 0.0, %v1118
    %v1120 = vpop.f32.mrf.mxu0
    %v1121 = vadd.f32 0.0, %v1120
    %1122 = vdwg.mxu0
    %1123 = vmatpush.bf16.msra.mxu0 0
    %1124 = vmatpush.bf16.msra.mxu0 0
    %1125 = vmatpush.bf16.msra.mxu0 0
    %1126 = vmatpush.bf16.msra.mxu0 0
    %1127 = vmatpush.bf16.msra.mxu0 0
    %1128 = vmatpush.bf16.msra.mxu0 0
    %1129 = vmatpush.bf16.msra.mxu0 0
    %1130 = vmatpush.bf16.msra.mxu0 %v1095
    %1131 = vmatmul.bf16.gmra.mxu0 %v1089
    %v1132 = vpop.f32.mrf.mxu0
    %v1133 = vadd.f32 0.0, %v1132
    %v1134 = vpop.f32.mrf.mxu0
    %v1135 = vadd.f32 0.0, %v1134
    %1136 = vdwg.mxu0
    %1137 = vmatpush.bf16.msra.mxu0 0
    %1138 = vmatpush.bf16.msra.mxu0 0
    %1139 = vmatpush.bf16.msra.mxu0 0
    %1140 = vmatpush.bf16.msra.mxu0 0
    %1141 = vmatpush.bf16.msra.mxu0 0
    %1142 = vmatpush.bf16.msra.mxu0 0
    %1143 = vmatpush.bf16.msra.mxu0 0
    %1144 = vmatpush.bf16.msra.mxu0 %v1098
    %1145 = vmatmul.bf16.gmra.mxu0 %v1089
    %v1146 = vpop.f32.mrf.mxu0
    %v1147 = vadd.f32 0.0, %v1146
    %v1148 = vpop.f32.mrf.mxu0
    %v1149 = vadd.f32 0.0, %v1148
    %1150 = vdwg.mxu0
    %1151 = vmatpush.bf16.msra.mxu0 0
    %1152 = vmatpush.bf16.msra.mxu0 0
    %1153 = vmatpush.bf16.msra.mxu0 0
    %1154 = vmatpush.bf16.msra.mxu0 0
    %1155 = vmatpush.bf16.msra.mxu0 0
    %1156 = vmatpush.bf16.msra.mxu0 0
    %1157 = vmatpush.bf16.msra.mxu0 0
    %1158 = vmatpush.bf16.msra.mxu0 %v1101
    %1159 = vmatmul.bf16.gmra.mxu0 %v1089
    %v1160 = vpop.f32.mrf.mxu0
    %v1161 = vadd.f32 0.0, %v1160
    %v1162 = vpop.f32.mrf.mxu0
    %v1163 = vadd.f32 0.0, %v1162
    %1164 = vdwg.mxu0
    %1165 = vmatpush.bf16.msra.mxu0 0
    %1166 = vmatpush.bf16.msra.mxu0 0
    %1167 = vmatpush.bf16.msra.mxu0 0
    %1168 = vmatpush.bf16.msra.mxu0 0
    %1169 = vmatpush.bf16.msra.mxu0 0
    %1170 = vmatpush.bf16.msra.mxu0 0
    %1171 = vmatpush.bf16.msra.mxu0 0
    %1172 = vmatpush.bf16.msra.mxu0 %v1104
    %1173 = vmatmul.bf16.gmra.mxu0 %v1089
    %v1174 = vpop.f32.mrf.mxu0
    %v1175 = vadd.f32 0.0, %v1174
    %v1176 = vpop.f32.mrf.mxu0
    %v1177 = vadd.f32 0.0, %v1176
    %1178 = vdwg.mxu0
    %1179 = vmatpush.bf16.msra.mxu0 0
    %1180 = vmatpush.bf16.msra.mxu0 0
    %1181 = vmatpush.bf16.msra.mxu0 0
    %1182 = vmatpush.bf16.msra.mxu0 0
    %1183 = vmatpush.bf16.msra.mxu0 0
    %1184 = vmatpush.bf16.msra.mxu0 0
    %1185 = vmatpush.bf16.msra.mxu0 0
    %1186 = vmatpush.bf16.msra.mxu0 %v1107
    %1187 = vmatmul.bf16.gmra.mxu0 %v1089
    %v1188 = vpop.f32.mrf.mxu0
    %v1189 = vadd.f32 0.0, %v1188
    %v1190 = vpop.f32.mrf.mxu0
    %v1191 = vadd.f32 0.0, %v1190
    %1192 = vdwg.mxu0
    %v1193 = vadd.f32 %v1047, %v1119
    %v1194 = vadd.f32 %v1048, %v1133
    %v1195 = vadd.f32 %v1049, %v1147
    %v1196 = vadd.f32 %v1050, %v1161
    %v1197 = vadd.f32 %v1051, %v1175
    %v1198 = vadd.f32 %v1052, %v1189
    %v1199 = vadd.f32 %v1053, %v1121
    %v1200 = vadd.f32 %v1054, %v1135
    %v1201 = vadd.f32 %v1055, %v1149
    %v1202 = vadd.f32 %v1056, %v1163
    %v1203 = vadd.f32 %v1057, %v1177
    %v1204 = vadd.f32 %v1058, %v1191
    %s1205 = scalar_lea.vmem %s4, 56
    %v1206 = vld [vmem:[%s1205] sm:$0xf]
    %v1207 = vld [vmem:[%s1205 + $0x4] sm:$0xf]
    %v1210 = vunpack.c.l.b16 %v1206
    %v1211 = vunpack.c.l.b16 %v1207
    %v1212 = vpack.c.b16 %v1211, %v1210
    %1213 = vrot.lane.b32.xlu0 %v230, 91
    %v1214 = vpop.permute.xlu0 %1213
    %1215 = vrot.lane.b32.xlu0 %v231, 91
    %v1216 = vpop.permute.xlu0 %1215
    %1217 = vrot.lane.b32.xlu0 %v232, 91
    %v1218 = vpop.permute.xlu0 %1217
    %1219 = vrot.lane.b32.xlu0 %v233, 91
    %v1220 = vpop.permute.xlu0 %1219
    %1221 = vrot.lane.b32.xlu0 %v234, 91
    %v1222 = vpop.permute.xlu0 %1221
    %1223 = vrot.lane.b32.xlu0 %v235, 91
    %v1224 = vpop.permute.xlu0 %1223
    %1225 = vrot.lane.b32.xlu0 %v236, 91
    %v1226 = vpop.permute.xlu0 %1225
    %vm1227 = vcmask 744448
    %v1228 = vsel %vm1227, %v1214, %v1216
    %v1229 = vsel %vm1227, %v1216, %v1218
    %v1230 = vsel %vm1227, %v1218, %v1220
    %v1231 = vsel %vm1227, %v1220, %v1222
    %v1232 = vsel %vm1227, %v1222, %v1224
    %v1233 = vsel %vm1227, %v1224, %v1226
    %v1235 = vsel %vm258, %v1212, 0
    %v1238 = vsel %vm262, %v1228, 0
    %v1241 = vsel %vm262, %v1229, 0
    %v1244 = vsel %vm262, %v1230, 0
    %v1247 = vsel %vm262, %v1231, 0
    %v1250 = vsel %vm262, %v1232, 0
    %v1253 = vsel %vm262, %v1233, 0
    %1255 = vmatpush.bf16.msra.mxu0 0
    %1256 = vmatpush.bf16.msra.mxu0 0
    %1257 = vmatpush.bf16.msra.mxu0 0
    %1258 = vmatpush.bf16.msra.mxu0 0
    %1259 = vmatpush.bf16.msra.mxu0 0
    %1260 = vmatpush.bf16.msra.mxu0 0
    %1261 = vmatpush.bf16.msra.mxu0 0
    %1262 = vmatpush.bf16.msra.mxu0 %v1238
    %1263 = vmatmul.bf16.gmra.mxu0 %v1235
    %v1264 = vpop.f32.mrf.mxu0
    %v1265 = vadd.f32 0.0, %v1264
    %v1266 = vpop.f32.mrf.mxu0
    %v1267 = vadd.f32 0.0, %v1266
    %1268 = vdwg.mxu0
    %1269 = vmatpush.bf16.msra.mxu0 0
    %1270 = vmatpush.bf16.msra.mxu0 0
    %1271 = vmatpush.bf16.msra.mxu0 0
    %1272 = vmatpush.bf16.msra.mxu0 0
    %1273 = vmatpush.bf16.msra.mxu0 0
    %1274 = vmatpush.bf16.msra.mxu0 0
    %1275 = vmatpush.bf16.msra.mxu0 0
    %1276 = vmatpush.bf16.msra.mxu0 %v1241
    %1277 = vmatmul.bf16.gmra.mxu0 %v1235
    %v1278 = vpop.f32.mrf.mxu0
    %v1279 = vadd.f32 0.0, %v1278
    %v1280 = vpop.f32.mrf.mxu0
    %v1281 = vadd.f32 0.0, %v1280
    %1282 = vdwg.mxu0
    %1283 = vmatpush.bf16.msra.mxu0 0
    %1284 = vmatpush.bf16.msra.mxu0 0
    %1285 = vmatpush.bf16.msra.mxu0 0
    %1286 = vmatpush.bf16.msra.mxu0 0
    %1287 = vmatpush.bf16.msra.mxu0 0
    %1288 = vmatpush.bf16.msra.mxu0 0
    %1289 = vmatpush.bf16.msra.mxu0 0
    %1290 = vmatpush.bf16.msra.mxu0 %v1244
    %1291 = vmatmul.bf16.gmra.mxu0 %v1235
    %v1292 = vpop.f32.mrf.mxu0
    %v1293 = vadd.f32 0.0, %v1292
    %v1294 = vpop.f32.mrf.mxu0
    %v1295 = vadd.f32 0.0, %v1294
    %1296 = vdwg.mxu0
    %1297 = vmatpush.bf16.msra.mxu0 0
    %1298 = vmatpush.bf16.msra.mxu0 0
    %1299 = vmatpush.bf16.msra.mxu0 0
    %1300 = vmatpush.bf16.msra.mxu0 0
    %1301 = vmatpush.bf16.msra.mxu0 0
    %1302 = vmatpush.bf16.msra.mxu0 0
    %1303 = vmatpush.bf16.msra.mxu0 0
    %1304 = vmatpush.bf16.msra.mxu0 %v1247
    %1305 = vmatmul.bf16.gmra.mxu0 %v1235
    %v1306 = vpop.f32.mrf.mxu0
    %v1307 = vadd.f32 0.0, %v1306
    %v1308 = vpop.f32.mrf.mxu0
    %v1309 = vadd.f32 0.0, %v1308
    %1310 = vdwg.mxu0
    %1311 = vmatpush.bf16.msra.mxu0 0
    %1312 = vmatpush.bf16.msra.mxu0 0
    %1313 = vmatpush.bf16.msra.mxu0 0
    %1314 = vmatpush.bf16.msra.mxu0 0
    %1315 = vmatpush.bf16.msra.mxu0 0
    %1316 = vmatpush.bf16.msra.mxu0 0
    %1317 = vmatpush.bf16.msra.mxu0 0
    %1318 = vmatpush.bf16.msra.mxu0 %v1250
    %1319 = vmatmul.bf16.gmra.mxu0 %v1235
    %v1320 = vpop.f32.mrf.mxu0
    %v1321 = vadd.f32 0.0, %v1320
    %v1322 = vpop.f32.mrf.mxu0
    %v1323 = vadd.f32 0.0, %v1322
    %1324 = vdwg.mxu0
    %1325 = vmatpush.bf16.msra.mxu0 0
    %1326 = vmatpush.bf16.msra.mxu0 0
    %1327 = vmatpush.bf16.msra.mxu0 0
    %1328 = vmatpush.bf16.msra.mxu0 0
    %1329 = vmatpush.bf16.msra.mxu0 0
    %1330 = vmatpush.bf16.msra.mxu0 0
    %1331 = vmatpush.bf16.msra.mxu0 0
    %1332 = vmatpush.bf16.msra.mxu0 %v1253
    %1333 = vmatmul.bf16.gmra.mxu0 %v1235
    %v1334 = vpop.f32.mrf.mxu0
    %v1335 = vadd.f32 0.0, %v1334
    %v1336 = vpop.f32.mrf.mxu0
    %v1337 = vadd.f32 0.0, %v1336
    %1338 = vdwg.mxu0
    %v1339 = vadd.f32 %v1193, %v1265
    %v1340 = vadd.f32 %v1194, %v1279
    %v1341 = vadd.f32 %v1195, %v1293
    %v1342 = vadd.f32 %v1196, %v1307
    %v1343 = vadd.f32 %v1197, %v1321
    %v1344 = vadd.f32 %v1198, %v1335
    %v1345 = vadd.f32 %v1199, %v1267
    %v1346 = vadd.f32 %v1200, %v1281
    %v1347 = vadd.f32 %v1201, %v1295
    %v1348 = vadd.f32 %v1202, %v1309
    %v1349 = vadd.f32 %v1203, %v1323
    %v1350 = vadd.f32 %v1204, %v1337
    %s1351 = scalar_lea.vmem %s4, 64
    %v1352 = vld [vmem:[%s1351] sm:$0xf]
    %v1353 = vld [vmem:[%s1351 + $0x4] sm:$0xf]
    %v1356 = vunpack.c.l.b16 %v1352
    %v1357 = vunpack.c.l.b16 %v1353
    %v1358 = vpack.c.b16 %v1357, %v1356
    %1359 = vrot.lane.b32.xlu0 %v230, 90
    %v1360 = vpop.permute.xlu0 %1359
    %1361 = vrot.lane.b32.xlu0 %v231, 90
    %v1362 = vpop.permute.xlu0 %1361
    %1363 = vrot.lane.b32.xlu0 %v232, 90
    %v1364 = vpop.permute.xlu0 %1363
    %1365 = vrot.lane.b32.xlu0 %v233, 90
    %v1366 = vpop.permute.xlu0 %1365
    %1367 = vrot.lane.b32.xlu0 %v234, 90
    %v1368 = vpop.permute.xlu0 %1367
    %1369 = vrot.lane.b32.xlu0 %v235, 90
    %v1370 = vpop.permute.xlu0 %1369
    %1371 = vrot.lane.b32.xlu0 %v236, 90
    %v1372 = vpop.permute.xlu0 %1371
    %vm1373 = vcmask 736256
    %v1374 = vsel %vm1373, %v1360, %v1362
    %v1375 = vsel %vm1373, %v1362, %v1364
    %v1376 = vsel %vm1373, %v1364, %v1366
    %v1377 = vsel %vm1373, %v1366, %v1368
    %v1378 = vsel %vm1373, %v1368, %v1370
    %v1379 = vsel %vm1373, %v1370, %v1372
    %v1381 = vsel %vm258, %v1358, 0
    %v1384 = vsel %vm262, %v1374, 0
    %v1387 = vsel %vm262, %v1375, 0
    %v1390 = vsel %vm262, %v1376, 0
    %v1393 = vsel %vm262, %v1377, 0
    %v1396 = vsel %vm262, %v1378, 0
    %v1399 = vsel %vm262, %v1379, 0
    %1401 = vmatpush.bf16.msra.mxu0 0
    %1402 = vmatpush.bf16.msra.mxu0 0
    %1403 = vmatpush.bf16.msra.mxu0 0
    %1404 = vmatpush.bf16.msra.mxu0 0
    %1405 = vmatpush.bf16.msra.mxu0 0
    %1406 = vmatpush.bf16.msra.mxu0 0
    %1407 = vmatpush.bf16.msra.mxu0 0
    %1408 = vmatpush.bf16.msra.mxu0 %v1384
    %1409 = vmatmul.bf16.gmra.mxu0 %v1381
    %v1410 = vpop.f32.mrf.mxu0
    %v1411 = vadd.f32 0.0, %v1410
    %v1412 = vpop.f32.mrf.mxu0
    %v1413 = vadd.f32 0.0, %v1412
    %1414 = vdwg.mxu0
    %1415 = vmatpush.bf16.msra.mxu0 0
    %1416 = vmatpush.bf16.msra.mxu0 0
    %1417 = vmatpush.bf16.msra.mxu0 0
    %1418 = vmatpush.bf16.msra.mxu0 0
    %1419 = vmatpush.bf16.msra.mxu0 0
    %1420 = vmatpush.bf16.msra.mxu0 0
    %1421 = vmatpush.bf16.msra.mxu0 0
    %1422 = vmatpush.bf16.msra.mxu0 %v1387
    %1423 = vmatmul.bf16.gmra.mxu0 %v1381
    %v1424 = vpop.f32.mrf.mxu0
    %v1425 = vadd.f32 0.0, %v1424
    %v1426 = vpop.f32.mrf.mxu0
    %v1427 = vadd.f32 0.0, %v1426
    %1428 = vdwg.mxu0
    %1429 = vmatpush.bf16.msra.mxu0 0
    %1430 = vmatpush.bf16.msra.mxu0 0
    %1431 = vmatpush.bf16.msra.mxu0 0
    %1432 = vmatpush.bf16.msra.mxu0 0
    %1433 = vmatpush.bf16.msra.mxu0 0
    %1434 = vmatpush.bf16.msra.mxu0 0
    %1435 = vmatpush.bf16.msra.mxu0 0
    %1436 = vmatpush.bf16.msra.mxu0 %v1390
    %1437 = vmatmul.bf16.gmra.mxu0 %v1381
    %v1438 = vpop.f32.mrf.mxu0
    %v1439 = vadd.f32 0.0, %v1438
    %v1440 = vpop.f32.mrf.mxu0
    %v1441 = vadd.f32 0.0, %v1440
    %1442 = vdwg.mxu0
    %1443 = vmatpush.bf16.msra.mxu0 0
    %1444 = vmatpush.bf16.msra.mxu0 0
    %1445 = vmatpush.bf16.msra.mxu0 0
    %1446 = vmatpush.bf16.msra.mxu0 0
    %1447 = vmatpush.bf16.msra.mxu0 0
    %1448 = vmatpush.bf16.msra.mxu0 0
    %1449 = vmatpush.bf16.msra.mxu0 0
    %1450 = vmatpush.bf16.msra.mxu0 %v1393
    %1451 = vmatmul.bf16.gmra.mxu0 %v1381
    %v1452 = vpop.f32.mrf.mxu0
    %v1453 = vadd.f32 0.0, %v1452
    %v1454 = vpop.f32.mrf.mxu0
    %v1455 = vadd.f32 0.0, %v1454
    %1456 = vdwg.mxu0
    %1457 = vmatpush.bf16.msra.mxu0 0
    %1458 = vmatpush.bf16.msra.mxu0 0
    %1459 = vmatpush.bf16.msra.mxu0 0
    %1460 = vmatpush.bf16.msra.mxu0 0
    %1461 = vmatpush.bf16.msra.mxu0 0
    %1462 = vmatpush.bf16.msra.mxu0 0
    %1463 = vmatpush.bf16.msra.mxu0 0
    %1464 = vmatpush.bf16.msra.mxu0 %v1396
    %1465 = vmatmul.bf16.gmra.mxu0 %v1381
    %v1466 = vpop.f32.mrf.mxu0
    %v1467 = vadd.f32 0.0, %v1466
    %v1468 = vpop.f32.mrf.mxu0
    %v1469 = vadd.f32 0.0, %v1468
    %1470 = vdwg.mxu0
    %1471 = vmatpush.bf16.msra.mxu0 0
    %1472 = vmatpush.bf16.msra.mxu0 0
    %1473 = vmatpush.bf16.msra.mxu0 0
    %1474 = vmatpush.bf16.msra.mxu0 0
    %1475 = vmatpush.bf16.msra.mxu0 0
    %1476 = vmatpush.bf16.msra.mxu0 0
    %1477 = vmatpush.bf16.msra.mxu0 0
    %1478 = vmatpush.bf16.msra.mxu0 %v1399
    %1479 = vmatmul.bf16.gmra.mxu0 %v1381
    %v1480 = vpop.f32.mrf.mxu0
    %v1481 = vadd.f32 0.0, %v1480
    %v1482 = vpop.f32.mrf.mxu0
    %v1483 = vadd.f32 0.0, %v1482
    %1484 = vdwg.mxu0
    %v1485 = vadd.f32 %v1339, %v1411
    %v1486 = vadd.f32 %v1340, %v1425
    %v1487 = vadd.f32 %v1341, %v1439
    %v1488 = vadd.f32 %v1342, %v1453
    %v1489 = vadd.f32 %v1343, %v1467
    %v1490 = vadd.f32 %v1344, %v1481
    %v1491 = vadd.f32 %v1345, %v1413
    %v1492 = vadd.f32 %v1346, %v1427
    %v1493 = vadd.f32 %v1347, %v1441
    %v1494 = vadd.f32 %v1348, %v1455
    %v1495 = vadd.f32 %v1349, %v1469
    %v1496 = vadd.f32 %v1350, %v1483
    %v1497 = vld [vmem:[%s5] sm:$0xff]
    %v1498 = vld [vmem:[%s5 + $0x8] sm:$0xff]
    %1500 = vset.pattern.permute.xlu0 0
    %1501 = vperm.xlu0 %1500, %v1497
    %v1502 = vpop.permute.xlu0 %1501
    %1505 = vset.pattern.permute.xlu0 0
    %1506 = vperm.xlu0 %1505, %v1498
    %v1507 = vpop.permute.xlu0 %1506
    %v1509 = vadd.f32 %v1485, %v1502
    %v1510 = vadd.f32 %v1486, %v1502
    %v1511 = vadd.f32 %v1487, %v1502
    %v1512 = vadd.f32 %v1488, %v1502
    %v1513 = vadd.f32 %v1489, %v1502
    %v1514 = vadd.f32 %v1490, %v1502
    %v1515 = vadd.f32 %v1491, %v1507
    %v1516 = vadd.f32 %v1492, %v1507
    %v1517 = vadd.f32 %v1493, %v1507
    %v1518 = vadd.f32 %v1494, %v1507
    %v1519 = vadd.f32 %v1495, %v1507
    %v1520 = vadd.f32 %v1496, %v1507
    %v1521 = vmax.f32 %v1509, %v1515
    %v1522 = vmax.f32 %v1510, %v1516
    %v1523 = vmax.f32 %v1511, %v1517
    %v1524 = vmax.f32 %v1512, %v1518
    %v1525 = vmax.f32 %v1513, %v1519
    %v1526 = vmax.f32 %v1514, %v1520
    %1527 = vst [vmem:[#allocation2] sm:$0xff] %v1521
    %1528 = vst [vmem:[#allocation2 + $0x8] sm:$0xff] %v1522
    %1529 = vst [vmem:[#allocation2 + $0x10] sm:$0xff] %v1523
    %1530 = vst [vmem:[#allocation2 + $0x18] sm:$0xff] %v1524
    %1531 = vst [vmem:[#allocation2 + $0x20] sm:$0xff] %v1525
    %1532 = vst [vmem:[#allocation2 + $0x28] sm:$0xff] %v1526
    // Predicated region
    $region26: #{tpu_custom_call.1} parent=1 // pred_check
      _
    $region27: #{tpu_custom_call.1} parent=1 // pred_check_branch
      %1534 = sbr.rel (0) target = $region29
    $region28: #{tpu_custom_call.1} parent=1 // pred_region
      %1536 = vsyncadd [#allocation3], 0
      %s1538 = sshll.u32 [#allocation2], 4
      %s1539 = int_to_ptr.vmem [resolvable:$true] %s1538
      %s1540 = sshll.u32 %s6, 4
      %s1541 = int_to_ptr.hbm [resolvable:$true] %s1540
      %1543 = dma.vmem_to_hbm [thread:$0]  %s1539, 768, %s1541, [#allocation3]
    $region29: #{tpu_custom_call.1} parent=1 // pred_fallthru
      _
    // Predicated region
    $region30: #{tpu_custom_call.1} parent=1 // pred_check
      _
    $region31: #{tpu_custom_call.1} parent=1 // pred_check_branch
      %1545 = sbr.rel (0) target = $region33
    $region32: #{tpu_custom_call.1} parent=1 // pred_region
      %1547 = dma.done [#allocation3], 768
    $region33: #{tpu_custom_call.1} parent=1 // pred_fallthru
      _
    %1548 = vsyncpa [#allocation3], 1

</llo_original>
